<compile_context>
chip_gen: v7x
topology: tpu7x:2x2x1
jax: 0.10.0
libtpu: 0.0.40
codegen_flags: <defaults>
</compile_context>

<pallas_src>
import functools
import math

import jax
import jax.numpy as jnp
import numpy as np
from jax import lax
from jax.experimental import pallas as pl
from jax.experimental.pallas import tpu as pltpu


_MAX_TB = 16                          # cap on (C,T)-slices per grid step (bounds unroll / per-step VMEM)
_MIN_GRID_STEPS = 4                   # >=2 pipelined blocks per v7x TensorCore
_FALLBACK_VMEM_CAP = 64 * 1024 * 1024  # v7x per-core physical VMEM; safe on every generation


def _round_up(x: int, m: int) -> int:
    return (x + m - 1) // m * m


def _vmem_capacity_bytes() -> int:
    """Physical VMEM per core, with a conservative fallback if the query is unavailable."""
    try:
        cap = getattr(pltpu.get_tpu_info(), "vmem_capacity_bytes", None)
        if cap:
            return int(cap)
    except Exception:
        pass
    return _FALLBACK_VMEM_CAP


def _bilinear_matrix_np(in_size: int, out_size: int) -> np.ndarray:
    """PyTorch F.interpolate(mode='bilinear', align_corners=False) weights, shape (out, in)."""
    scale = in_size / out_size
    dst = np.arange(out_size, dtype=np.float64)
    src = np.maximum((dst + 0.5) * scale - 0.5, 0.0)   # PyTorch clamps negative src to 0
    i0 = np.clip(np.floor(src).astype(np.int64), 0, in_size - 1)
    i1 = np.minimum(i0 + 1, in_size - 1)
    w1 = (src - i0).astype(np.float32)
    w0 = (1.0 - w1).astype(np.float32)
    mat = np.zeros((out_size, in_size), dtype=np.float32)
    rows = np.arange(out_size)
    np.add.at(mat, (rows, i0), w0)
    np.add.at(mat, (rows, i1), w1)
    return mat


@functools.lru_cache(maxsize=64)
def _weight_matrices(h: int, w: int, new_h: int, new_w: int):
    """Cached per shape: no scatter-built weights on the hot path for repeated video shapes."""
    wh = jnp.asarray(_bilinear_matrix_np(h, new_h))        # (new_h, h)
    wwt = jnp.asarray(_bilinear_matrix_np(w, new_w).T)     # (w, new_w)
    return wh, wwt


def _resize_kernel(x_ref, wh_ref, wwt_ref, o_ref, tmp_ref, *, tb, w_first, compute_dtype):
    # x_ref:   (TB, H, W)
    # wh_ref:  (new_h, H)        single-buffered constant
    # wwt_ref: (W, new_w)        single-buffered constant
    # o_ref:   (TB, new_h, new_w)
    # tmp_ref: (H, new_w) if w_first else (new_h, W)   -- explicit per-slice VMEM staging
    wh = wh_ref[...].astype(compute_dtype)
    wwt = wwt_ref[...].astype(compute_dtype)

    def body(i, carry):
        xi = x_ref[i].astype(compute_dtype)
        if w_first:
            # W (lane-dim) contraction first, then H contraction.
            tmp_ref[...] = jnp.dot(xi, wwt, preferred_element_type=jnp.float32)
            o_ref[i] = jnp.dot(wh, tmp_ref[...].astype(compute_dtype),
                               preferred_element_type=jnp.float32)
        else:
            # H contraction first, then W (lane-dim) contraction.
            tmp_ref[...] = jnp.dot(wh, xi, preferred_element_type=jnp.float32)
            o_ref[i] = jnp.dot(tmp_ref[...].astype(compute_dtype), wwt,
                               preferred_element_type=jnp.float32)
        return carry

    lax.fori_loop(0, tb, body, 0, unroll=True)


def _choose_tb(b: int, vmem_cap_slices: int) -> int:
    cap = max(1, min(vmem_cap_slices, _MAX_TB))
    # Keep >= _MIN_GRID_STEPS grid steps (when b allows) so the pipeline has depth and
    # both v7x TensorCores get >= 2 blocks each.
    cap = min(cap, max(1, b // min(_MIN_GRID_STEPS, b)))
    # Largest divisor of b that fits -> batch dim needs no padding at all.
    for d in range(min(cap, b), 0, -1):
        if b % d == 0:
            return d
    return 1


def long_side_scale(x: jnp.ndarray, size: int, interpolation: str = "bilinear",
                    compute_dtype=jnp.float32) -> jnp.ndarray:
    """x: (C, T, H, W) float32 -> (C, T, new_h, new_w) float32."""
    assert x.ndim == 4
    assert x.dtype == jnp.float32
    assert interpolation == "bilinear"  # TODO(synk): other F.interpolate modes not implemented
    c, t, h, w = x.shape
    if w < h:
        new_w = int(math.floor(float(w) / h * size))
        new_h = size
    else:
        new_w = size
        new_h = int(math.floor(float(h) / w * size))

    wh, wwt = _weight_matrices(h, w, new_h, new_w)
    b = c * t
    x_flat = x.reshape(b, h, w)   # leading-dim merge: free

    # Contraction-order choice with an MXU-tile-aware cost model (M->8, K/N->128),
    # not raw FLOPs, so a tiny-M second stage is penalized correctly.
    def mm_cost(m, k, n):
        return _round_up(m, 8) * _round_up(k, 128) * _round_up(n, 128)

    w_first = (mm_cost(h, w, new_w) + mm_cost(new_h, h, new_w)
               <= mm_cost(new_h, h, w) + mm_cost(new_h, w, new_w))
    interm_shape = (h, new_w) if w_first else (new_h, w)

    # Generation-aware VMEM sizing.
    vmem_cap = _vmem_capacity_bytes()
    vmem_limit = (vmem_cap * 7) // 8          # hard limit passed to Mosaic
    vmem_budget = (vmem_cap * 7) // 10        # working-set target used to size TB

    weight_bytes = 4 * (new_h * h + w * new_w)            # single-buffered (Buffered(1))
    interm_bytes = 4 * interm_shape[0] * interm_shape[1]  # explicit scratch, counted
    io_bytes_per_slice = 4 * 2 * (h * w + new_h * new_w)  # double-buffered in/out blocks
    avail = vmem_budget - weight_bytes - interm_bytes
    cap_slices = max(1, avail // io_bytes_per_slice) if avail > io_bytes_per_slice else 1
    tb = _choose_tb(b, int(cap_slices))
    # TODO(synk): if even tb=1 exceeds the budget (>=1440p frames on v7x), add a second
    # grid axis tiling output-H via the 2-tap band structure of Wh.

    kernel = functools.partial(_resize_kernel, tb=tb, w_first=w_first,
                               compute_dtype=compute_dtype)

    out_flat = pl.pallas_call(
        kernel,
        out_shape=jax.ShapeDtypeStruct((b, new_h, new_w), jnp.float32),
        grid_spec=pltpu.PrefetchScalarGridSpec(
            num_scalar_prefetch=0,
            grid=(b // tb,),
            in_specs=[
                # Last-two block dims equal the full array dims -> no (8,128) padding needed,
                # no wrapper-side jnp.pad, no trailing output slice.
                pl.BlockSpec((tb, h, w), lambda i: (i, 0, 0)),
                pl.BlockSpec((new_h, h), lambda i: (0, 0), pipeline_mode=pl.Buffered(1)),
                pl.BlockSpec((w, new_w), lambda i: (0, 0), pipeline_mode=pl.Buffered(1)),
            ],
            out_specs=pl.BlockSpec((tb, new_h, new_w), lambda i: (i, 0, 0)),
            scratch_shapes=[pltpu.VMEM(interm_shape, jnp.float32)],
        ),
        compiler_params=pltpu.CompilerParams(
            dimension_semantics=("parallel",),
            vmem_limit_bytes=int(vmem_limit),
        ),
    )(x_flat, wh, wwt)

    return out_flat.reshape(c, t, new_h, new_w)


def _reference_resize(x, new_h, new_w):
    # Pure-JAX reference using the same separable formulation.
    _, _, h, w = x.shape
    wh, wwt = _weight_matrices(h, w, new_h, new_w)
    return jnp.einsum("oh,cthw,wn->cton", wh, x, wwt)


if __name__ == "__main__":
    key = jax.random.PRNGKey(0)
    cases = [
        ((4, 8, 12, 16), 8),    # long side W, downscale; b=32 -> tb=8, 4 grid steps
        ((3, 5, 20, 12), 10),   # long side H, downscale; b=15 -> tb=3, 5 grid steps
        ((2, 3, 8, 32), 64),    # upscale;                b=6  -> tb=1, 6 grid steps
    ]
    for idx, (shape, size) in enumerate(cases):
        key, sub = jax.random.split(key)
        x = jax.random.normal(sub, shape, dtype=jnp.float32)
        c, t, h, w = shape
        if w < h:
            new_w = int(math.floor(float(w) / h * size)); new_h = size
        else:
            new_w = size; new_h = int(math.floor(float(h) / w * size))

        out = jax.block_until_ready(long_side_scale(x, size))
        assert out.shape == (c, t, new_h, new_w), (idx, out.shape)

        ref = _reference_resize(x, new_h, new_w)
        err = float(jnp.max(jnp.abs(out - ref)))
        assert err < 1e-4, (idx, err)

    # Opt-in reduced-precision path (bf16 MXU operands, f32 accumulation).
    x = jax.random.normal(jax.random.PRNGKey(1), (4, 8, 12, 16), dtype=jnp.float32)
    out_bf16 = jax.block_until_ready(long_side_scale(x, 8, compute_dtype=jnp.bfloat16))
    ref = _reference_resize(x, 6, 8)
    assert out_bf16.shape == (4, 8, 6, 8)
    assert float(jnp.max(jnp.abs(out_bf16 - ref))) < 0.1

    print("KERNEL_OK")
</pallas_src>

<mosaic_0001>
module attributes {stable_mosaic.version = 11 : i64} {
  func.func @_resize_kernel(%arg0: i32, %arg1: memref<8x12x16xf32, #tpu.memory_space<vmem>>, %arg2: memref<6x12xf32, #tpu.memory_space<vmem>>, %arg3: memref<16x8xf32, #tpu.memory_space<vmem>>, %arg4: memref<8x6x8xf32, #tpu.memory_space<vmem>>, %arg5: memref<6x16xf32, #tpu.memory_space<vmem>>) attributes {dimension_semantics = [#tpu.dimension_semantics<parallel>], iteration_bounds = array<i64: 4>, scalar_prefetch = 0 : i64, scratch_operands = 1 : i64, tpu.core_type = #tpu.core_type<tc>, window_params = [{transform_indices = @transform_0, window_bounds = array<i64: 8, 12, 16>}, {pipeline_mode = #tpu.pipeline_mode<synchronous>, transform_indices = @transform_1, window_bounds = array<i64: 6, 12>}, {pipeline_mode = #tpu.pipeline_mode<synchronous>, transform_indices = @transform_2, window_bounds = array<i64: 16, 8>}, {transform_indices = @transform_3, window_bounds = array<i64: 8, 6, 8>}]} {
    %c0 = arith.constant 0 : index
    %c0_0 = arith.constant 0 : index
    %0 = vector.load %arg2[%c0, %c0_0] : memref<6x12xf32, #tpu.memory_space<vmem>>, vector<6x12xf32>
    %c0_1 = arith.constant 0 : index
    %c0_2 = arith.constant 0 : index
    %1 = vector.load %arg3[%c0_1, %c0_2] : memref<16x8xf32, #tpu.memory_space<vmem>>, vector<16x8xf32>
    %c0_i32 = arith.constant 0 : i32
    %2 = arith.index_cast %c0_i32 : i32 to index
    %c0_3 = arith.constant 0 : index
    %c0_4 = arith.constant 0 : index
    %3 = vector.load %arg1[%2, %c0_3, %c0_4] : memref<8x12x16xf32, #tpu.memory_space<vmem>>, vector<1x12x16xf32>
    %4 = vector.shape_cast %3 : vector<1x12x16xf32> to vector<12x16xf32>
    %cst = arith.constant dense<0.000000e+00> : vector<6x16xf32>
    %5 = tpu.matmul %0, %4, %cst {dimension_numbers = #tpu.dot_dimension_numbers<[1], [0], [0], [1], [0, 0, 1, 1], [], []>} : vector<6x12xf32>, vector<12x16xf32>, vector<6x16xf32> -> vector<6x16xf32>
    %c0_5 = arith.constant 0 : index
    %c0_6 = arith.constant 0 : index
    %6 = vector.load %arg5[%c0_5, %c0_6] : memref<6x16xf32, #tpu.memory_space<vmem>>, vector<6x16xf32>
    tpu.vector_store %arg5[%c0_5, %c0_6], %5 {strides = array<i32>} : memref<6x16xf32, #tpu.memory_space<vmem>>, vector<6x16xf32>,
    %c0_7 = arith.constant 0 : index
    %c0_8 = arith.constant 0 : index
    %7 = vector.load %arg5[%c0_7, %c0_8] : memref<6x16xf32, #tpu.memory_space<vmem>>, vector<6x16xf32>
    %cst_9 = arith.constant dense<0.000000e+00> : vector<6x8xf32>
    %8 = tpu.matmul %7, %1, %cst_9 {dimension_numbers = #tpu.dot_dimension_numbers<[1], [0], [0], [1], [0, 0, 1, 1], [], []>} : vector<6x16xf32>, vector<16x8xf32>, vector<6x8xf32> -> vector<6x8xf32>
    %9 = arith.index_cast %c0_i32 : i32 to index
    %c0_10 = arith.constant 0 : index
    %c0_11 = arith.constant 0 : index
    %10 = vector.load %arg4[%9, %c0_10, %c0_11] : memref<8x6x8xf32, #tpu.memory_space<vmem>>, vector<1x6x8xf32>
    %11 = vector.shape_cast %10 : vector<1x6x8xf32> to vector<6x8xf32>
    %12 = vector.shape_cast %8 : vector<6x8xf32> to vector<1x6x8xf32>
    tpu.vector_store %arg4[%9, %c0_10, %c0_11], %12 {strides = array<i32>} : memref<8x6x8xf32, #tpu.memory_space<vmem>>, vector<1x6x8xf32>,
    %c1_i32 = arith.constant 1 : i32
    %13 = arith.index_cast %c1_i32 : i32 to index
    %c0_12 = arith.constant 0 : index
    %c0_13 = arith.constant 0 : index
    %14 = vector.load %arg1[%13, %c0_12, %c0_13] : memref<8x12x16xf32, #tpu.memory_space<vmem>>, vector<1x12x16xf32>
    %15 = vector.shape_cast %14 : vector<1x12x16xf32> to vector<12x16xf32>
    %cst_14 = arith.constant dense<0.000000e+00> : vector<6x16xf32>
    %16 = tpu.matmul %0, %15, %cst_14 {dimension_numbers = #tpu.dot_dimension_numbers<[1], [0], [0], [1], [0, 0, 1, 1], [], []>} : vector<6x12xf32>, vector<12x16xf32>, vector<6x16xf32> -> vector<6x16xf32>
    %c0_15 = arith.constant 0 : index
    %c0_16 = arith.constant 0 : index
    %17 = vector.load %arg5[%c0_15, %c0_16] : memref<6x16xf32, #tpu.memory_space<vmem>>, vector<6x16xf32>
    tpu.vector_store %arg5[%c0_15, %c0_16], %16 {strides = array<i32>} : memref<6x16xf32, #tpu.memory_space<vmem>>, vector<6x16xf32>,
    %c0_17 = arith.constant 0 : index
    %c0_18 = arith.constant 0 : index
    %18 = vector.load %arg5[%c0_17, %c0_18] : memref<6x16xf32, #tpu.memory_space<vmem>>, vector<6x16xf32>
    %cst_19 = arith.constant dense<0.000000e+00> : vector<6x8xf32>
    %19 = tpu.matmul %18, %1, %cst_19 {dimension_numbers = #tpu.dot_dimension_numbers<[1], [0], [0], [1], [0, 0, 1, 1], [], []>} : vector<6x16xf32>, vector<16x8xf32>, vector<6x8xf32> -> vector<6x8xf32>
    %20 = arith.index_cast %c1_i32 : i32 to index
    %c0_20 = arith.constant 0 : index
    %c0_21 = arith.constant 0 : index
    %21 = vector.load %arg4[%20, %c0_20, %c0_21] : memref<8x6x8xf32, #tpu.memory_space<vmem>>, vector<1x6x8xf32>
    %22 = vector.shape_cast %21 : vector<1x6x8xf32> to vector<6x8xf32>
    %23 = vector.shape_cast %19 : vector<6x8xf32> to vector<1x6x8xf32>
    tpu.vector_store %arg4[%20, %c0_20, %c0_21], %23 {strides = array<i32>} : memref<8x6x8xf32, #tpu.memory_space<vmem>>, vector<1x6x8xf32>,
    %c2_i32 = arith.constant 2 : i32
    %24 = arith.index_cast %c2_i32 : i32 to index
    %c0_22 = arith.constant 0 : index
    %c0_23 = arith.constant 0 : index
    %25 = vector.load %arg1[%24, %c0_22, %c0_23] : memref<8x12x16xf32, #tpu.memory_space<vmem>>, vector<1x12x16xf32>
    %26 = vector.shape_cast %25 : vector<1x12x16xf32> to vector<12x16xf32>
    %cst_24 = arith.constant dense<0.000000e+00> : vector<6x16xf32>
    %27 = tpu.matmul %0, %26, %cst_24 {dimension_numbers = #tpu.dot_dimension_numbers<[1], [0], [0], [1], [0, 0, 1, 1], [], []>} : vector<6x12xf32>, vector<12x16xf32>, vector<6x16xf32> -> vector<6x16xf32>
    %c0_25 = arith.constant 0 : index
    %c0_26 = arith.constant 0 : index
    %28 = vector.load %arg5[%c0_25, %c0_26] : memref<6x16xf32, #tpu.memory_space<vmem>>, vector<6x16xf32>
    tpu.vector_store %arg5[%c0_25, %c0_26], %27 {strides = array<i32>} : memref<6x16xf32, #tpu.memory_space<vmem>>, vector<6x16xf32>,
    %c0_27 = arith.constant 0 : index
    %c0_28 = arith.constant 0 : index
    %29 = vector.load %arg5[%c0_27, %c0_28] : memref<6x16xf32, #tpu.memory_space<vmem>>, vector<6x16xf32>
    %cst_29 = arith.constant dense<0.000000e+00> : vector<6x8xf32>
    %30 = tpu.matmul %29, %1, %cst_29 {dimension_numbers = #tpu.dot_dimension_numbers<[1], [0], [0], [1], [0, 0, 1, 1], [], []>} : vector<6x16xf32>, vector<16x8xf32>, vector<6x8xf32> -> vector<6x8xf32>
    %31 = arith.index_cast %c2_i32 : i32 to index
    %c0_30 = arith.constant 0 : index
    %c0_31 = arith.constant 0 : index
    %32 = vector.load %arg4[%31, %c0_30, %c0_31] : memref<8x6x8xf32, #tpu.memory_space<vmem>>, vector<1x6x8xf32>
    %33 = vector.shape_cast %32 : vector<1x6x8xf32> to vector<6x8xf32>
    %34 = vector.shape_cast %30 : vector<6x8xf32> to vector<1x6x8xf32>
    tpu.vector_store %arg4[%31, %c0_30, %c0_31], %34 {strides = array<i32>} : memref<8x6x8xf32, #tpu.memory_space<vmem>>, vector<1x6x8xf32>,
    %c3_i32 = arith.constant 3 : i32
    %35 = arith.index_cast %c3_i32 : i32 to index
    %c0_32 = arith.constant 0 : index
    %c0_33 = arith.constant 0 : index
    %36 = vector.load %arg1[%35, %c0_32, %c0_33] : memref<8x12x16xf32, #tpu.memory_space<vmem>>, vector<1x12x16xf32>
    %37 = vector.shape_cast %36 : vector<1x12x16xf32> to vector<12x16xf32>
    %cst_34 = arith.constant dense<0.000000e+00> : vector<6x16xf32>
    %38 = tpu.matmul %0, %37, %cst_34 {dimension_numbers = #tpu.dot_dimension_numbers<[1], [0], [0], [1], [0, 0, 1, 1], [], []>} : vector<6x12xf32>, vector<12x16xf32>, vector<6x16xf32> -> vector<6x16xf32>
    %c0_35 = arith.constant 0 : index
    %c0_36 = arith.constant 0 : index
    %39 = vector.load %arg5[%c0_35, %c0_36] : memref<6x16xf32, #tpu.memory_space<vmem>>, vector<6x16xf32>
    tpu.vector_store %arg5[%c0_35, %c0_36], %38 {strides = array<i32>} : memref<6x16xf32, #tpu.memory_space<vmem>>, vector<6x16xf32>,
    %c0_37 = arith.constant 0 : index
    %c0_38 = arith.constant 0 : index
    %40 = vector.load %arg5[%c0_37, %c0_38] : memref<6x16xf32, #tpu.memory_space<vmem>>, vector<6x16xf32>
    %cst_39 = arith.constant dense<0.000000e+00> : vector<6x8xf32>
    %41 = tpu.matmul %40, %1, %cst_39 {dimension_numbers = #tpu.dot_dimension_numbers<[1], [0], [0], [1], [0, 0, 1, 1], [], []>} : vector<6x16xf32>, vector<16x8xf32>, vector<6x8xf32> -> vector<6x8xf32>
    %42 = arith.index_cast %c3_i32 : i32 to index
    %c0_40 = arith.constant 0 : index
    %c0_41 = arith.constant 0 : index
    %43 = vector.load %arg4[%42, %c0_40, %c0_41] : memref<8x6x8xf32, #tpu.memory_space<vmem>>, vector<1x6x8xf32>
    %44 = vector.shape_cast %43 : vector<1x6x8xf32> to vector<6x8xf32>
    %45 = vector.shape_cast %41 : vector<6x8xf32> to vector<1x6x8xf32>
    tpu.vector_store %arg4[%42, %c0_40, %c0_41], %45 {strides = array<i32>} : memref<8x6x8xf32, #tpu.memory_space<vmem>>, vector<1x6x8xf32>,
    %c4_i32 = arith.constant 4 : i32
    %46 = arith.index_cast %c4_i32 : i32 to index
    %c0_42 = arith.constant 0 : index
    %c0_43 = arith.constant 0 : index
    %47 = vector.load %arg1[%46, %c0_42, %c0_43] : memref<8x12x16xf32, #tpu.memory_space<vmem>>, vector<1x12x16xf32>
    %48 = vector.shape_cast %47 : vector<1x12x16xf32> to vector<12x16xf32>
    %cst_44 = arith.constant dense<0.000000e+00> : vector<6x16xf32>
    %49 = tpu.matmul %0, %48, %cst_44 {dimension_numbers = #tpu.dot_dimension_numbers<[1], [0], [0], [1], [0, 0, 1, 1], [], []>} : vector<6x12xf32>, vector<12x16xf32>, vector<6x16xf32> -> vector<6x16xf32>
    %c0_45 = arith.constant 0 : index
    %c0_46 = arith.constant 0 : index
    %50 = vector.load %arg5[%c0_45, %c0_46] : memref<6x16xf32, #tpu.memory_space<vmem>>, vector<6x16xf32>
    tpu.vector_store %arg5[%c0_45, %c0_46], %49 {strides = array<i32>} : memref<6x16xf32, #tpu.memory_space<vmem>>, vector<6x16xf32>,
    %c0_47 = arith.constant 0 : index
    %c0_48 = arith.constant 0 : index
    %51 = vector.load %arg5[%c0_47, %c0_48] : memref<6x16xf32, #tpu.memory_space<vmem>>, vector<6x16xf32>
    %cst_49 = arith.constant dense<0.000000e+00> : vector<6x8xf32>
    %52 = tpu.matmul %51, %1, %cst_49 {dimension_numbers = #tpu.dot_dimension_numbers<[1], [0], [0], [1], [0, 0, 1, 1], [], []>} : vector<6x16xf32>, vector<16x8xf32>, vector<6x8xf32> -> vector<6x8xf32>
    %53 = arith.index_cast %c4_i32 : i32 to index
    %c0_50 = arith.constant 0 : index
    %c0_51 = arith.constant 0 : index
    %54 = vector.load %arg4[%53, %c0_50, %c0_51] : memref<8x6x8xf32, #tpu.memory_space<vmem>>, vector<1x6x8xf32>
    %55 = vector.shape_cast %54 : vector<1x6x8xf32> to vector<6x8xf32>
    %56 = vector.shape_cast %52 : vector<6x8xf32> to vector<1x6x8xf32>
    tpu.vector_store %arg4[%53, %c0_50, %c0_51], %56 {strides = array<i32>} : memref<8x6x8xf32, #tpu.memory_space<vmem>>, vector<1x6x8xf32>,
    %c5_i32 = arith.constant 5 : i32
    %57 = arith.index_cast %c5_i32 : i32 to index
    %c0_52 = arith.constant 0 : index
    %c0_53 = arith.constant 0 : index
    %58 = vector.load %arg1[%57, %c0_52, %c0_53] : memref<8x12x16xf32, #tpu.memory_space<vmem>>, vector<1x12x16xf32>
    %59 = vector.shape_cast %58 : vector<1x12x16xf32> to vector<12x16xf32>
    %cst_54 = arith.constant dense<0.000000e+00> : vector<6x16xf32>
    %60 = tpu.matmul %0, %59, %cst_54 {dimension_numbers = #tpu.dot_dimension_numbers<[1], [0], [0], [1], [0, 0, 1, 1], [], []>} : vector<6x12xf32>, vector<12x16xf32>, vector<6x16xf32> -> vector<6x16xf32>
    %c0_55 = arith.constant 0 : index
    %c0_56 = arith.constant 0 : index
    %61 = vector.load %arg5[%c0_55, %c0_56] : memref<6x16xf32, #tpu.memory_space<vmem>>, vector<6x16xf32>
    tpu.vector_store %arg5[%c0_55, %c0_56], %60 {strides = array<i32>} : memref<6x16xf32, #tpu.memory_space<vmem>>, vector<6x16xf32>,
    %c0_57 = arith.constant 0 : index
    %c0_58 = arith.constant 0 : index
    %62 = vector.load %arg5[%c0_57, %c0_58] : memref<6x16xf32, #tpu.memory_space<vmem>>, vector<6x16xf32>
    %cst_59 = arith.constant dense<0.000000e+00> : vector<6x8xf32>
    %63 = tpu.matmul %62, %1, %cst_59 {dimension_numbers = #tpu.dot_dimension_numbers<[1], [0], [0], [1], [0, 0, 1, 1], [], []>} : vector<6x16xf32>, vector<16x8xf32>, vector<6x8xf32> -> vector<6x8xf32>
    %64 = arith.index_cast %c5_i32 : i32 to index
    %c0_60 = arith.constant 0 : index
    %c0_61 = arith.constant 0 : index
    %65 = vector.load %arg4[%64, %c0_60, %c0_61] : memref<8x6x8xf32, #tpu.memory_space<vmem>>, vector<1x6x8xf32>
    %66 = vector.shape_cast %65 : vector<1x6x8xf32> to vector<6x8xf32>
    %67 = vector.shape_cast %63 : vector<6x8xf32> to vector<1x6x8xf32>
    tpu.vector_store %arg4[%64, %c0_60, %c0_61], %67 {strides = array<i32>} : memref<8x6x8xf32, #tpu.memory_space<vmem>>, vector<1x6x8xf32>,
    %c6_i32 = arith.constant 6 : i32
    %68 = arith.index_cast %c6_i32 : i32 to index
    %c0_62 = arith.constant 0 : index
    %c0_63 = arith.constant 0 : index
    %69 = vector.load %arg1[%68, %c0_62, %c0_63] : memref<8x12x16xf32, #tpu.memory_space<vmem>>, vector<1x12x16xf32>
    %70 = vector.shape_cast %69 : vector<1x12x16xf32> to vector<12x16xf32>
    %cst_64 = arith.constant dense<0.000000e+00> : vector<6x16xf32>
    %71 = tpu.matmul %0, %70, %cst_64 {dimension_numbers = #tpu.dot_dimension_numbers<[1], [0], [0], [1], [0, 0, 1, 1], [], []>} : vector<6x12xf32>, vector<12x16xf32>, vector<6x16xf32> -> vector<6x16xf32>
    %c0_65 = arith.constant 0 : index
    %c0_66 = arith.constant 0 : index
    %72 = vector.load %arg5[%c0_65, %c0_66] : memref<6x16xf32, #tpu.memory_space<vmem>>, vector<6x16xf32>
    tpu.vector_store %arg5[%c0_65, %c0_66], %71 {strides = array<i32>} : memref<6x16xf32, #tpu.memory_space<vmem>>, vector<6x16xf32>,
    %c0_67 = arith.constant 0 : index
    %c0_68 = arith.constant 0 : index
    %73 = vector.load %arg5[%c0_67, %c0_68] : memref<6x16xf32, #tpu.memory_space<vmem>>, vector<6x16xf32>
    %cst_69 = arith.constant dense<0.000000e+00> : vector<6x8xf32>
    %74 = tpu.matmul %73, %1, %cst_69 {dimension_numbers = #tpu.dot_dimension_numbers<[1], [0], [0], [1], [0, 0, 1, 1], [], []>} : vector<6x16xf32>, vector<16x8xf32>, vector<6x8xf32> -> vector<6x8xf32>
    %75 = arith.index_cast %c6_i32 : i32 to index
    %c0_70 = arith.constant 0 : index
    %c0_71 = arith.constant 0 : index
    %76 = vector.load %arg4[%75, %c0_70, %c0_71] : memref<8x6x8xf32, #tpu.memory_space<vmem>>, vector<1x6x8xf32>
    %77 = vector.shape_cast %76 : vector<1x6x8xf32> to vector<6x8xf32>
    %78 = vector.shape_cast %74 : vector<6x8xf32> to vector<1x6x8xf32>
    tpu.vector_store %arg4[%75, %c0_70, %c0_71], %78 {strides = array<i32>} : memref<8x6x8xf32, #tpu.memory_space<vmem>>, vector<1x6x8xf32>,
    %c7_i32 = arith.constant 7 : i32
    %79 = arith.index_cast %c7_i32 : i32 to index
    %c0_72 = arith.constant 0 : index
    %c0_73 = arith.constant 0 : index
    %80 = vector.load %arg1[%79, %c0_72, %c0_73] : memref<8x12x16xf32, #tpu.memory_space<vmem>>, vector<1x12x16xf32>
    %81 = vector.shape_cast %80 : vector<1x12x16xf32> to vector<12x16xf32>
    %cst_74 = arith.constant dense<0.000000e+00> : vector<6x16xf32>
    %82 = tpu.matmul %0, %81, %cst_74 {dimension_numbers = #tpu.dot_dimension_numbers<[1], [0], [0], [1], [0, 0, 1, 1], [], []>} : vector<6x12xf32>, vector<12x16xf32>, vector<6x16xf32> -> vector<6x16xf32>
    %c0_75 = arith.constant 0 : index
    %c0_76 = arith.constant 0 : index
    %83 = vector.load %arg5[%c0_75, %c0_76] : memref<6x16xf32, #tpu.memory_space<vmem>>, vector<6x16xf32>
    tpu.vector_store %arg5[%c0_75, %c0_76], %82 {strides = array<i32>} : memref<6x16xf32, #tpu.memory_space<vmem>>, vector<6x16xf32>,
    %c0_77 = arith.constant 0 : index
    %c0_78 = arith.constant 0 : index
    %84 = vector.load %arg5[%c0_77, %c0_78] : memref<6x16xf32, #tpu.memory_space<vmem>>, vector<6x16xf32>
    %cst_79 = arith.constant dense<0.000000e+00> : vector<6x8xf32>
    %85 = tpu.matmul %84, %1, %cst_79 {dimension_numbers = #tpu.dot_dimension_numbers<[1], [0], [0], [1], [0, 0, 1, 1], [], []>} : vector<6x16xf32>, vector<16x8xf32>, vector<6x8xf32> -> vector<6x8xf32>
    %86 = arith.index_cast %c7_i32 : i32 to index
    %c0_80 = arith.constant 0 : index
    %c0_81 = arith.constant 0 : index
    %87 = vector.load %arg4[%86, %c0_80, %c0_81] : memref<8x6x8xf32, #tpu.memory_space<vmem>>, vector<1x6x8xf32>
    %88 = vector.shape_cast %87 : vector<1x6x8xf32> to vector<6x8xf32>
    %89 = vector.shape_cast %85 : vector<6x8xf32> to vector<1x6x8xf32>
    tpu.vector_store %arg4[%86, %c0_80, %c0_81], %89 {strides = array<i32>} : memref<8x6x8xf32, #tpu.memory_space<vmem>>, vector<1x6x8xf32>,
    %c8_i32 = arith.constant 8 : i32
    return
  }
  func.func @transform_0(%arg0: i32) -> (i32, i32, i32) {
    %c0_i32 = arith.constant 0 : i32
    %c0_i32_0 = arith.constant 0 : i32
    %c0_i32_1 = arith.constant 0 : i32
    return %arg0, %c0_i32, %c0_i32_0 : i32, i32, i32
  }
  func.func @transform_1(%arg0: i32) -> (i32, i32) {
    %c0_i32 = arith.constant 0 : i32
    %c0_i32_0 = arith.constant 0 : i32
    %c0_i32_1 = arith.constant 0 : i32
    return %c0_i32, %c0_i32_0 : i32, i32
  }
  func.func @transform_2(%arg0: i32) -> (i32, i32) {
    %c0_i32 = arith.constant 0 : i32
    %c0_i32_0 = arith.constant 0 : i32
    %c0_i32_1 = arith.constant 0 : i32
    return %c0_i32, %c0_i32_0 : i32, i32
  }
  func.func @transform_3(%arg0: i32) -> (i32, i32, i32) {
    %c0_i32 = arith.constant 0 : i32
    %c0_i32_0 = arith.constant 0 : i32
    %c0_i32_1 = arith.constant 0 : i32
    return %arg0, %c0_i32, %c0_i32_0 : i32, i32, i32
  }
}

</mosaic_0001>

<llo_original>
// kernel: tpu_custom_call.1
$region0: #{tpu_custom_call.1}
  #allocation0 [shape = 'u32[]', space=smem, size = 0x4, offset = 0x4, fixed_abs, tag = 'smem constant byte address 0x4 - core index']
  #allocation1 [shape = 'u32[144,128]{1,0:T(1,128)}', space=vmem, size = 0x12000, scoped, tag = 'internal scratch']
  #allocation2 [shape = 'f32[6,16]{1,0:T(8,128)}', space=vmem, size = 0x1000, scoped, tag = 'scratch operand']
  %s0 = inlined_call_operand.vmem [shape: f32[32,12,16], index: 0, kind: input, shape index: {}]
  %s1 = inlined_call_operand.vmem [shape: f32[6,12], index: 1, kind: input, shape index: {}]
  %s2 = inlined_call_operand.vmem [shape: f32[16,8], index: 2, kind: input, shape index: {}]
  %s3 = inlined_call_operand.vmem [shape: f32[32,6,8], index: 3, kind: output, shape index: {}]
  %s4 = sld [smem:[#allocation0]]
  $region45: #{tpu_custom_call.1} parent=0
    _
  %s6 = ssub.s32 1, %s4
  %s7 = scalar_select 0, %s6, %s4
  loop: start=0, step=1, limit=6
  $region2: #{tpu_custom_call.1} parent=0 // loop_pre_header
    _
  $region3: #{tpu_custom_call.1} parent=0 // loop_header
    %s9 = sphi 0, %s13
    %p10 = scmp.ge.s32.totalorder %s9, 6
    %s19 = sphi 0, %s21
    %s22 = sphi 0, %s19
    %s23 = sphi 0, %s22
    %s39 = sphi 0, %s23
    %s43 = sphi 0, %s43
    %s45 = sphi 0, %s43
    %s46 = sphi 0, %s45
    %s60 = sphi 0, %s46
    %s64 = sphi 0, %s64
    %s66 = sphi 0, %s64
    %s67 = sphi 0, %s66
    %s81 = sphi 0, %s67
    %s87 = sphi 0, %s89
    %s90 = sphi 0, %s87
    %s91 = sphi 0, %s90
    %s107 = sphi 0, %s91
  $region4: #{tpu_custom_call.1} parent=0 // loop_header_branch
    %12 = sbr.rel (%p10) target = $region8
  $region5: #{tpu_custom_call.1} parent=0 // loop_body
    %s14 = ssub.s32 %s9, 1
    %s15 = ssub.s32 %s9, 2
    %s16 = sadd.s32 %s9, 1
    %s17 = ssub.s32 %s9, %s16
    %p18 = scmp.eq.s32.totalorder %s17, 0
    %s20 = sadd.s32 %s19, 1
    %s21 = scalar_select %p18, %s19, %s20
    %p24 = pneg %p18
    %p25 = scmp.eq.s32.totalorder %s9, 3
    %p26 = por %p24, %p25
    %p27 = scmp.ne.s32.totalorder %s19, %s22
    %p28 = scmp.eq.s32.totalorder %s9, 0
    %p29 = por %p27, %p28
    %p30 = scmp.ne.s32.totalorder %s19, %s22
    %p31 = scmp.eq.s32.totalorder %s14, 3
    %p32 = por %p30, %p31
    %p33 = scmp.ne.s32.totalorder %s22, %s23
    %p34 = scmp.eq.s32.totalorder %s14, 0
    %p35 = por %p33, %p34
    %p36 = scmp.ne.s32.totalorder %s22, %s23
    %p37 = scmp.eq.s32.totalorder %s15, 3
    %p38 = por %p36, %p37
    %p40 = scmp.ne.s32.totalorder %s23, %s39
    %p41 = scmp.eq.s32.totalorder %s15, 0
    %p42 = por %p40, %p41
    %s44 = sadd.s32 %s43, 1
    %p47 = scmp.eq.s32.totalorder %s9, 3
    %p48 = scmp.ne.s32.totalorder %s43, %s45
    %p49 = scmp.eq.s32.totalorder %s9, 0
    %p50 = por %p48, %p49
    %p51 = scmp.ne.s32.totalorder %s43, %s45
    %p52 = scmp.eq.s32.totalorder %s14, 3
    %p53 = por %p51, %p52
    %p54 = scmp.ne.s32.totalorder %s45, %s46
    %p55 = scmp.eq.s32.totalorder %s14, 0
    %p56 = por %p54, %p55
    %p57 = scmp.ne.s32.totalorder %s45, %s46
    %p58 = scmp.eq.s32.totalorder %s15, 3
    %p59 = por %p57, %p58
    %p61 = scmp.ne.s32.totalorder %s46, %s60
    %p62 = scmp.eq.s32.totalorder %s15, 0
    %p63 = por %p61, %p62
    %s65 = sadd.s32 %s64, 1
    %p68 = scmp.eq.s32.totalorder %s9, 3
    %p69 = scmp.ne.s32.totalorder %s64, %s66
    %p70 = scmp.eq.s32.totalorder %s9, 0
    %p71 = por %p69, %p70
    %p72 = scmp.ne.s32.totalorder %s64, %s66
    %p73 = scmp.eq.s32.totalorder %s14, 3
    %p74 = por %p72, %p73
    %p75 = scmp.ne.s32.totalorder %s66, %s67
    %p76 = scmp.eq.s32.totalorder %s14, 0
    %p77 = por %p75, %p76
    %p78 = scmp.ne.s32.totalorder %s66, %s67
    %p79 = scmp.eq.s32.totalorder %s15, 3
    %p80 = por %p78, %p79
    %p82 = scmp.ne.s32.totalorder %s67, %s81
    %p83 = scmp.eq.s32.totalorder %s15, 0
    %p84 = por %p82, %p83
    %s85 = ssub.s32 %s9, %s16
    %p86 = scmp.eq.s32.totalorder %s85, 0
    %s88 = sadd.s32 %s87, 1
    %s89 = scalar_select %p86, %s87, %s88
    %p92 = pneg %p86
    %p93 = scmp.eq.s32.totalorder %s9, 3
    %p94 = por %p92, %p93
    %p95 = scmp.ne.s32.totalorder %s87, %s90
    %p96 = scmp.eq.s32.totalorder %s9, 0
    %p97 = por %p95, %p96
    %p98 = scmp.ne.s32.totalorder %s87, %s90
    %p99 = scmp.eq.s32.totalorder %s14, 3
    %p100 = por %p98, %p99
    %p101 = scmp.ne.s32.totalorder %s90, %s91
    %p102 = scmp.eq.s32.totalorder %s14, 0
    %p103 = por %p101, %p102
    %p104 = scmp.ne.s32.totalorder %s90, %s91
    %p105 = scmp.eq.s32.totalorder %s15, 3
    %p106 = por %p104, %p105
    %p108 = scmp.ne.s32.totalorder %s91, %s107
    %p109 = scmp.eq.s32.totalorder %s15, 0
    %p110 = por %p108, %p109
    %p111 = scmp.le.s32.totalorder 1, %s9
    %p112 = scmp.lt.s32.totalorder %s9, 5
    %p113 = pnand %p111, %p112
    %p114 = pneg %p113
    // Predicated region
    $region9: #{tpu_custom_call.1} parent=5 // pred_check
      _
    $region10: #{tpu_custom_call.1} parent=5 // pred_check_branch
      %116 = sbr.rel (%p113) target = $region12
    $region11: #{tpu_custom_call.1} parent=5 // pred_region
      %s117 = ssub.s32 %s9, 1
      // Predicated region
      $region13: #{tpu_custom_call.1} parent=11 // pred_check
        %p118 = pneg %p56
      $region14: #{tpu_custom_call.1} parent=11 // pred_check_branch
        %120 = sbr.rel (%p118) target = $region16
      $region15: #{tpu_custom_call.1} parent=11 // pred_region
        _
      $region16: #{tpu_custom_call.1} parent=11 // pred_fallthru
        _
      // Predicated region
      $region17: #{tpu_custom_call.1} parent=11 // pred_check
        %p121 = pneg %p77
      $region18: #{tpu_custom_call.1} parent=11 // pred_check_branch
        %123 = sbr.rel (%p121) target = $region20
      $region19: #{tpu_custom_call.1} parent=11 // pred_region
        _
      $region20: #{tpu_custom_call.1} parent=11 // pred_fallthru
        _
    $region12: #{tpu_custom_call.1} parent=5 // pred_fallthru
      _
    %p124 = scmp.lt.s32.totalorder %s9, 4
    // Predicated region
    $region21: #{tpu_custom_call.1} parent=5 // pred_check
      %p125 = pneg %p124
    $region22: #{tpu_custom_call.1} parent=5 // pred_check_branch
      %127 = sbr.rel (%p125) target = $region24
    $region23: #{tpu_custom_call.1} parent=5 // pred_region
      // Predicated region
      $region25: #{tpu_custom_call.1} parent=23 // pred_check
        %p128 = pneg %p29
      $region26: #{tpu_custom_call.1} parent=23 // pred_check_branch
        %130 = sbr.rel (%p128) target = $region28
      $region27: #{tpu_custom_call.1} parent=23 // pred_region
        %s131 = smul.u32 8, %s9
        %p132 = scmp.lt.s32.totalorder %s131, 31
        %s133 = scalar_select %p132, %s131, 31
        %s134 = smul.addr %s133, 2
        %s135 = smul.addr %s134, 8
        %s136 = scalar_lea.vmem %s0, %s135
        %s137 = smul.u32 8, %s9
      $region28: #{tpu_custom_call.1} parent=23 // pred_fallthru
        _
    $region24: #{tpu_custom_call.1} parent=5 // pred_fallthru
      _
    %p138 = scmp.le.s32.totalorder 1, %s9
    %p139 = scmp.lt.s32.totalorder %s9, 5
    %p140 = pnand %p138, %p139
    %p141 = pneg %p140
    // Predicated region
    $region29: #{tpu_custom_call.1} parent=5 // pred_check
      _
    $region30: #{tpu_custom_call.1} parent=5 // pred_check_branch
      %143 = sbr.rel (%p140) target = $region32
    $region31: #{tpu_custom_call.1} parent=5 // pred_region
      %s144 = ssub.s32 %s9, 1
      %s145 = smul.u32 8, %s14
      %p146 = scmp.lt.s32.totalorder %s145, 31
      %s147 = scalar_select %p146, %s145, 31
      %s148 = smul.addr %s147, 2
      %s149 = smul.addr %s148, 8
      %s150 = scalar_lea.vmem %s0, %s149
      %p151 = pneg %p35
      %p152 = pneg %p32
      %p153 = pneg %p56
      %p154 = pneg %p53
      %p155 = pneg %p77
      %p156 = pneg %p74
      %p157 = pneg %p103
      %p158 = pneg %p100
      %s159 = smul.u32 8, %s14
      %p160 = scmp.lt.s32.totalorder %s159, 31
      %s161 = scalar_select %p160, %s159, 31
      %s162 = smul.addr %s161, 8
      %s163 = scalar_lea.vmem %s3, %s162
      %s164 = smul.u32 8, %s14
      %p165 = scmp.lt.s32.totalorder %s164, 31
      %s166 = scalar_select %p165, %s164, 31
      %s167 = smul.addr %s166, 2
      %s168 = smul.addr %s167, 8
      %s169 = scalar_lea.vmem %s0, %s168
      %s170 = smul.u32 8, %s14
      %s171 = smul.u32 8, %s14
      %p172 = scmp.lt.s32.totalorder %s171, 31
      %s173 = scalar_select %p172, %s171, 31
      %s174 = smul.addr %s173, 8
      %s175 = scalar_lea.vmem %s3, %s174
      %s176 = smul.u32 8, %s14
      %v177 = vld [vmem:[%s1] sm:$0x3f]
      %v178 = vld [vmem:[%s2] sm:$0xff]
      %v179 = vld [vmem:[%s2 + $0x8] sm:$0xff]
      %v180 = vld [vmem:[%s169] sm:$0xff]
      %v181 = vld [vmem:[%s169 + $0x8] sm:$0xf]
      %vm182 = vcmask 97280
      %v184 = vsel %vm182, %v177, 0
      %vm186 = vcmask 1043456
      %v188 = vsel %vm186, %v181, 0
      %190 = vmatprep.subr.mxu0 0.0
      %191 = vmatpush1.msra.mxu0 %v180
      %192 = vmatprep.subr.mxu0 0.0
      %193 = vmatpush1.msra.mxu0 %v188
      %194 = vmatprep.subr.mxu0 0.0
      %195 = vmatpush1.msra.mxu0 0.0
      %196 = vmatprep.subr.mxu0 0.0
      %197 = vmatpush1.msra.mxu0 0.0
      %198 = vmatprep.subr.mxu0 0.0
      %199 = vmatpush1.msra.mxu0 0.0
      %200 = vmatprep.subr.mxu0 0.0
      %201 = vmatpush1.msra.mxu0 0.0
      %202 = vmatprep.subr.mxu0 0.0
      %203 = vmatpush1.msra.mxu0 0.0
      %204 = vmatprep.subr.mxu0 0.0
      %205 = vmatpush1.msra.mxu0 0.0
      %206 = vmatprep.subr.mxu0 0.0
      %207 = vmatpush1.msra.mxu0 0.0
      %208 = vmatprep.subr.mxu0 0.0
      %209 = vmatpush1.msra.mxu0 0.0
      %210 = vmatprep.subr.mxu0 0.0
      %211 = vmatpush1.msra.mxu0 0.0
      %212 = vmatprep.subr.mxu0 0.0
      %213 = vmatpush1.msra.mxu0 0.0
      %214 = vmatprep.subr.mxu0 0.0
      %215 = vmatpush1.msra.mxu0 0.0
      %216 = vmatprep.subr.mxu0 0.0
      %217 = vmatpush1.msra.mxu0 0.0
      %218 = vmatprep.subr.mxu0 0.0
      %219 = vmatpush1.msra.mxu0 0.0
      %220 = vmatprep.subr.mxu0 0.0
      %221 = vmatpush1.msra.mxu0 0.0
      %222 = vmatprep.subr.mxu0 0.0
      %223 = vmatpush1.msra.mxu0 0.0
      %224 = vmatprep.subr.mxu0 0.0
      %225 = vmatpush1.msra.mxu0 0.0
      %226 = vmatprep.subr.mxu0 0.0
      %227 = vmatpush1.msra.mxu0 0.0
      %228 = vmatprep.subr.mxu0 0.0
      %229 = vmatpush1.msra.mxu0 0.0
      %230 = vmatprep.subr.mxu0 0.0
      %231 = vmatpush1.msra.mxu0 0.0
      %232 = vmatprep.subr.mxu0 0.0
      %233 = vmatpush1.msra.mxu0 0.0
      %234 = vmatprep.subr.mxu0 0.0
      %235 = vmatpush1.msra.mxu0 0.0
      %236 = vmatprep.subr.mxu0 0.0
      %237 = vmatpush1.msra.mxu0 0.0
      %238 = vmatprep.subr.mxu0 0.0
      %239 = vmatpush1.msra.mxu0 0.0
      %240 = vmatprep.subr.mxu0 0.0
      %241 = vmatpush1.msra.mxu0 0.0
      %242 = vmatprep.subr.mxu0 0.0
      %243 = vmatpush1.msra.mxu0 0.0
      %244 = vmatprep.subr.mxu0 0.0
      %245 = vmatpush1.msra.mxu0 0.0
      %246 = vmatprep.subr.mxu0 0.0
      %247 = vmatpush1.msra.mxu0 0.0
      %248 = vmatprep.subr.mxu0 0.0
      %249 = vmatpush1.msra.mxu0 0.0
      %250 = vmatprep.subr.mxu0 0.0
      %251 = vmatpush1.msra.mxu0 0.0
      %252 = vmatprep.subr.mxu0 0.0
      %253 = vmatpush1.msra.mxu0 0.0
      %254 = vmatprep.mubr.f32.mxu0 0.0
      %255 = vmatmul.mubr.f32.gmra.mrb[0].mxu0 %v184
      %v256 = vpop.f32.mrb[0].mxu0
      %v257 = vadd.f32 0.0, %v256
      %v258 = vpop.f32.mrb[0].mxu0
      %259 = vdwg.mxu0
      %vm260 = vcmask 128000
      %261 = vst.msk [vmem:[#allocation2] sm:$0x3f] %vm260, %v257
      %v262 = vld [vmem:[#allocation2] sm:$0x3f]
      %vm263 = vcmask 130048
      %v265 = vsel %vm263, %v262, 0
      %267 = vmatprep.subr.mxu0 0.0
      %268 = vmatpush1.msra.mxu0 %v178
      %269 = vmatprep.subr.mxu0 0.0
      %270 = vmatpush1.msra.mxu0 %v179
      %271 = vmatprep.subr.mxu0 0.0
      %272 = vmatpush1.msra.mxu0 0.0
      %273 = vmatprep.subr.mxu0 0.0
      %274 = vmatpush1.msra.mxu0 0.0
      %275 = vmatprep.subr.mxu0 0.0
      %276 = vmatpush1.msra.mxu0 0.0
      %277 = vmatprep.subr.mxu0 0.0
      %278 = vmatpush1.msra.mxu0 0.0
      %279 = vmatprep.subr.mxu0 0.0
      %280 = vmatpush1.msra.mxu0 0.0
      %281 = vmatprep.subr.mxu0 0.0
      %282 = vmatpush1.msra.mxu0 0.0
      %283 = vmatprep.subr.mxu0 0.0
      %284 = vmatpush1.msra.mxu0 0.0
      %285 = vmatprep.subr.mxu0 0.0
      %286 = vmatpush1.msra.mxu0 0.0
      %287 = vmatprep.subr.mxu0 0.0
      %288 = vmatpush1.msra.mxu0 0.0
      %289 = vmatprep.subr.mxu0 0.0
      %290 = vmatpush1.msra.mxu0 0.0
      %291 = vmatprep.subr.mxu0 0.0
      %292 = vmatpush1.msra.mxu0 0.0
      %293 = vmatprep.subr.mxu0 0.0
      %294 = vmatpush1.msra.mxu0 0.0
      %295 = vmatprep.subr.mxu0 0.0
      %296 = vmatpush1.msra.mxu0 0.0
      %297 = vmatprep.subr.mxu0 0.0
      %298 = vmatpush1.msra.mxu0 0.0
      %299 = vmatprep.subr.mxu0 0.0
      %300 = vmatpush1.msra.mxu0 0.0
      %301 = vmatprep.subr.mxu0 0.0
      %302 = vmatpush1.msra.mxu0 0.0
      %303 = vmatprep.subr.mxu0 0.0
      %304 = vmatpush1.msra.mxu0 0.0
      %305 = vmatprep.subr.mxu0 0.0
      %306 = vmatpush1.msra.mxu0 0.0
      %307 = vmatprep.subr.mxu0 0.0
      %308 = vmatpush1.msra.mxu0 0.0
      %309 = vmatprep.subr.mxu0 0.0
      %310 = vmatpush1.msra.mxu0 0.0
      %311 = vmatprep.subr.mxu0 0.0
      %312 = vmatpush1.msra.mxu0 0.0
      %313 = vmatprep.subr.mxu0 0.0
      %314 = vmatpush1.msra.mxu0 0.0
      %315 = vmatprep.subr.mxu0 0.0
      %316 = vmatpush1.msra.mxu0 0.0
      %317 = vmatprep.subr.mxu0 0.0
      %318 = vmatpush1.msra.mxu0 0.0
      %319 = vmatprep.subr.mxu0 0.0
      %320 = vmatpush1.msra.mxu0 0.0
      %321 = vmatprep.subr.mxu0 0.0
      %322 = vmatpush1.msra.mxu0 0.0
      %323 = vmatprep.subr.mxu0 0.0
      %324 = vmatpush1.msra.mxu0 0.0
      %325 = vmatprep.subr.mxu0 0.0
      %326 = vmatpush1.msra.mxu0 0.0
      %327 = vmatprep.subr.mxu0 0.0
      %328 = vmatpush1.msra.mxu0 0.0
      %329 = vmatprep.subr.mxu0 0.0
      %330 = vmatpush1.msra.mxu0 0.0
      %331 = vmatprep.mubr.f32.mxu0 0.0
      %332 = vmatmul.mubr.f32.gmra.mrb[0].mxu0 %v265
      %v333 = vpop.f32.mrb[0].mxu0
      %v334 = vadd.f32 0.0, %v333
      %v335 = vpop.f32.mrb[0].mxu0
      %336 = vdwg.mxu0
      %vm337 = vcmask 62464
      %338 = vst.msk [vmem:[%s175] sm:$0x3f] %vm337, %v334
      %s339 = scalar_lea.vmem %s169, 16
      %v340 = vld [vmem:[%s339] sm:$0xff]
      %v341 = vld [vmem:[%s339 + $0x8] sm:$0xf]
      %v343 = vsel %vm186, %v341, 0
      %345 = vmatprep.subr.mxu0 0.0
      %346 = vmatpush1.msra.mxu0 %v340
      %347 = vmatprep.subr.mxu0 0.0
      %348 = vmatpush1.msra.mxu0 %v343
      %349 = vmatprep.subr.mxu0 0.0
      %350 = vmatpush1.msra.mxu0 0.0
      %351 = vmatprep.subr.mxu0 0.0
      %352 = vmatpush1.msra.mxu0 0.0
      %353 = vmatprep.subr.mxu0 0.0
      %354 = vmatpush1.msra.mxu0 0.0
      %355 = vmatprep.subr.mxu0 0.0
      %356 = vmatpush1.msra.mxu0 0.0
      %357 = vmatprep.subr.mxu0 0.0
      %358 = vmatpush1.msra.mxu0 0.0
      %359 = vmatprep.subr.mxu0 0.0
      %360 = vmatpush1.msra.mxu0 0.0
      %361 = vmatprep.subr.mxu0 0.0
      %362 = vmatpush1.msra.mxu0 0.0
      %363 = vmatprep.subr.mxu0 0.0
      %364 = vmatpush1.msra.mxu0 0.0
      %365 = vmatprep.subr.mxu0 0.0
      %366 = vmatpush1.msra.mxu0 0.0
      %367 = vmatprep.subr.mxu0 0.0
      %368 = vmatpush1.msra.mxu0 0.0
      %369 = vmatprep.subr.mxu0 0.0
      %370 = vmatpush1.msra.mxu0 0.0
      %371 = vmatprep.subr.mxu0 0.0
      %372 = vmatpush1.msra.mxu0 0.0
      %373 = vmatprep.subr.mxu0 0.0
      %374 = vmatpush1.msra.mxu0 0.0
      %375 = vmatprep.subr.mxu0 0.0
      %376 = vmatpush1.msra.mxu0 0.0
      %377 = vmatprep.subr.mxu0 0.0
      %378 = vmatpush1.msra.mxu0 0.0
      %379 = vmatprep.subr.mxu0 0.0
      %380 = vmatpush1.msra.mxu0 0.0
      %381 = vmatprep.subr.mxu0 0.0
      %382 = vmatpush1.msra.mxu0 0.0
      %383 = vmatprep.subr.mxu0 0.0
      %384 = vmatpush1.msra.mxu0 0.0
      %385 = vmatprep.subr.mxu0 0.0
      %386 = vmatpush1.msra.mxu0 0.0
      %387 = vmatprep.subr.mxu0 0.0
      %388 = vmatpush1.msra.mxu0 0.0
      %389 = vmatprep.subr.mxu0 0.0
      %390 = vmatpush1.msra.mxu0 0.0
      %391 = vmatprep.subr.mxu0 0.0
      %392 = vmatpush1.msra.mxu0 0.0
      %393 = vmatprep.subr.mxu0 0.0
      %394 = vmatpush1.msra.mxu0 0.0
      %395 = vmatprep.subr.mxu0 0.0
      %396 = vmatpush1.msra.mxu0 0.0
      %397 = vmatprep.subr.mxu0 0.0
      %398 = vmatpush1.msra.mxu0 0.0
      %399 = vmatprep.subr.mxu0 0.0
      %400 = vmatpush1.msra.mxu0 0.0
      %401 = vmatprep.subr.mxu0 0.0
      %402 = vmatpush1.msra.mxu0 0.0
      %403 = vmatprep.subr.mxu0 0.0
      %404 = vmatpush1.msra.mxu0 0.0
      %405 = vmatprep.subr.mxu0 0.0
      %406 = vmatpush1.msra.mxu0 0.0
      %407 = vmatprep.subr.mxu0 0.0
      %408 = vmatpush1.msra.mxu0 0.0
      %409 = vmatprep.mubr.f32.mxu0 0.0
      %410 = vmatmul.mubr.f32.gmra.mrb[0].mxu0 %v184
      %v411 = vpop.f32.mrb[0].mxu0
      %v412 = vadd.f32 0.0, %v411
      %v413 = vpop.f32.mrb[0].mxu0
      %414 = vdwg.mxu0
      %415 = vst.msk [vmem:[#allocation2] sm:$0x3f] %vm260, %v412
      %v416 = vld [vmem:[#allocation2] sm:$0x3f]
      %v418 = vsel %vm263, %v416, 0
      %420 = vmatprep.subr.mxu0 0.0
      %421 = vmatpush1.msra.mxu0 %v178
      %422 = vmatprep.subr.mxu0 0.0
      %423 = vmatpush1.msra.mxu0 %v179
      %424 = vmatprep.subr.mxu0 0.0
      %425 = vmatpush1.msra.mxu0 0.0
      %426 = vmatprep.subr.mxu0 0.0
      %427 = vmatpush1.msra.mxu0 0.0
      %428 = vmatprep.subr.mxu0 0.0
      %429 = vmatpush1.msra.mxu0 0.0
      %430 = vmatprep.subr.mxu0 0.0
      %431 = vmatpush1.msra.mxu0 0.0
      %432 = vmatprep.subr.mxu0 0.0
      %433 = vmatpush1.msra.mxu0 0.0
      %434 = vmatprep.subr.mxu0 0.0
      %435 = vmatpush1.msra.mxu0 0.0
      %436 = vmatprep.subr.mxu0 0.0
      %437 = vmatpush1.msra.mxu0 0.0
      %438 = vmatprep.subr.mxu0 0.0
      %439 = vmatpush1.msra.mxu0 0.0
      %440 = vmatprep.subr.mxu0 0.0
      %441 = vmatpush1.msra.mxu0 0.0
      %442 = vmatprep.subr.mxu0 0.0
      %443 = vmatpush1.msra.mxu0 0.0
      %444 = vmatprep.subr.mxu0 0.0
      %445 = vmatpush1.msra.mxu0 0.0
      %446 = vmatprep.subr.mxu0 0.0
      %447 = vmatpush1.msra.mxu0 0.0
      %448 = vmatprep.subr.mxu0 0.0
      %449 = vmatpush1.msra.mxu0 0.0
      %450 = vmatprep.subr.mxu0 0.0
      %451 = vmatpush1.msra.mxu0 0.0
      %452 = vmatprep.subr.mxu0 0.0
      %453 = vmatpush1.msra.mxu0 0.0
      %454 = vmatprep.subr.mxu0 0.0
      %455 = vmatpush1.msra.mxu0 0.0
      %456 = vmatprep.subr.mxu0 0.0
      %457 = vmatpush1.msra.mxu0 0.0
      %458 = vmatprep.subr.mxu0 0.0
      %459 = vmatpush1.msra.mxu0 0.0
      %460 = vmatprep.subr.mxu0 0.0
      %461 = vmatpush1.msra.mxu0 0.0
      %462 = vmatprep.subr.mxu0 0.0
      %463 = vmatpush1.msra.mxu0 0.0
      %464 = vmatprep.subr.mxu0 0.0
      %465 = vmatpush1.msra.mxu0 0.0
      %466 = vmatprep.subr.mxu0 0.0
      %467 = vmatpush1.msra.mxu0 0.0
      %468 = vmatprep.subr.mxu0 0.0
      %469 = vmatpush1.msra.mxu0 0.0
      %470 = vmatprep.subr.mxu0 0.0
      %471 = vmatpush1.msra.mxu0 0.0
      %472 = vmatprep.subr.mxu0 0.0
      %473 = vmatpush1.msra.mxu0 0.0
      %474 = vmatprep.subr.mxu0 0.0
      %475 = vmatpush1.msra.mxu0 0.0
      %476 = vmatprep.subr.mxu0 0.0
      %477 = vmatpush1.msra.mxu0 0.0
      %478 = vmatprep.subr.mxu0 0.0
      %479 = vmatpush1.msra.mxu0 0.0
      %480 = vmatprep.subr.mxu0 0.0
      %481 = vmatpush1.msra.mxu0 0.0
      %482 = vmatprep.subr.mxu0 0.0
      %483 = vmatpush1.msra.mxu0 0.0
      %484 = vmatprep.mubr.f32.mxu0 0.0
      %485 = vmatmul.mubr.f32.gmra.mrb[0].mxu0 %v418
      %v486 = vpop.f32.mrb[0].mxu0
      %v487 = vadd.f32 0.0, %v486
      %v488 = vpop.f32.mrb[0].mxu0
      %489 = vdwg.mxu0
      %s490 = scalar_lea.vmem %s175, 8
      %491 = vst.msk [vmem:[%s490] sm:$0x3f] %vm337, %v487
      %s492 = scalar_lea.vmem %s169, 32
      %v493 = vld [vmem:[%s492] sm:$0xff]
      %v494 = vld [vmem:[%s492 + $0x8] sm:$0xf]
      %v496 = vsel %vm186, %v494, 0
      %498 = vmatprep.subr.mxu0 0.0
      %499 = vmatpush1.msra.mxu0 %v493
      %500 = vmatprep.subr.mxu0 0.0
      %501 = vmatpush1.msra.mxu0 %v496
      %502 = vmatprep.subr.mxu0 0.0
      %503 = vmatpush1.msra.mxu0 0.0
      %504 = vmatprep.subr.mxu0 0.0
      %505 = vmatpush1.msra.mxu0 0.0
      %506 = vmatprep.subr.mxu0 0.0
      %507 = vmatpush1.msra.mxu0 0.0
      %508 = vmatprep.subr.mxu0 0.0
      %509 = vmatpush1.msra.mxu0 0.0
      %510 = vmatprep.subr.mxu0 0.0
      %511 = vmatpush1.msra.mxu0 0.0
      %512 = vmatprep.subr.mxu0 0.0
      %513 = vmatpush1.msra.mxu0 0.0
      %514 = vmatprep.subr.mxu0 0.0
      %515 = vmatpush1.msra.mxu0 0.0
      %516 = vmatprep.subr.mxu0 0.0
      %517 = vmatpush1.msra.mxu0 0.0
      %518 = vmatprep.subr.mxu0 0.0
      %519 = vmatpush1.msra.mxu0 0.0
      %520 = vmatprep.subr.mxu0 0.0
      %521 = vmatpush1.msra.mxu0 0.0
      %522 = vmatprep.subr.mxu0 0.0
      %523 = vmatpush1.msra.mxu0 0.0
      %524 = vmatprep.subr.mxu0 0.0
      %525 = vmatpush1.msra.mxu0 0.0
      %526 = vmatprep.subr.mxu0 0.0
      %527 = vmatpush1.msra.mxu0 0.0
      %528 = vmatprep.subr.mxu0 0.0
      %529 = vmatpush1.msra.mxu0 0.0
      %530 = vmatprep.subr.mxu0 0.0
      %531 = vmatpush1.msra.mxu0 0.0
      %532 = vmatprep.subr.mxu0 0.0
      %533 = vmatpush1.msra.mxu0 0.0
      %534 = vmatprep.subr.mxu0 0.0
      %535 = vmatpush1.msra.mxu0 0.0
      %536 = vmatprep.subr.mxu0 0.0
      %537 = vmatpush1.msra.mxu0 0.0
      %538 = vmatprep.subr.mxu0 0.0
      %539 = vmatpush1.msra.mxu0 0.0
      %540 = vmatprep.subr.mxu0 0.0
      %541 = vmatpush1.msra.mxu0 0.0
      %542 = vmatprep.subr.mxu0 0.0
      %543 = vmatpush1.msra.mxu0 0.0
      %544 = vmatprep.subr.mxu0 0.0
      %545 = vmatpush1.msra.mxu0 0.0
      %546 = vmatprep.subr.mxu0 0.0
      %547 = vmatpush1.msra.mxu0 0.0
      %548 = vmatprep.subr.mxu0 0.0
      %549 = vmatpush1.msra.mxu0 0.0
      %550 = vmatprep.subr.mxu0 0.0
      %551 = vmatpush1.msra.mxu0 0.0
      %552 = vmatprep.subr.mxu0 0.0
      %553 = vmatpush1.msra.mxu0 0.0
      %554 = vmatprep.subr.mxu0 0.0
      %555 = vmatpush1.msra.mxu0 0.0
      %556 = vmatprep.subr.mxu0 0.0
      %557 = vmatpush1.msra.mxu0 0.0
      %558 = vmatprep.subr.mxu0 0.0
      %559 = vmatpush1.msra.mxu0 0.0
      %560 = vmatprep.subr.mxu0 0.0
      %561 = vmatpush1.msra.mxu0 0.0
      %562 = vmatprep.mubr.f32.mxu0 0.0
      %563 = vmatmul.mubr.f32.gmra.mrb[0].mxu0 %v184
      %v564 = vpop.f32.mrb[0].mxu0
      %v565 = vadd.f32 0.0, %v564
      %v566 = vpop.f32.mrb[0].mxu0
      %567 = vdwg.mxu0
      %568 = vst.msk [vmem:[#allocation2] sm:$0x3f] %vm260, %v565
      %v569 = vld [vmem:[#allocation2] sm:$0x3f]
      %v571 = vsel %vm263, %v569, 0
      %573 = vmatprep.subr.mxu0 0.0
      %574 = vmatpush1.msra.mxu0 %v178
      %575 = vmatprep.subr.mxu0 0.0
      %576 = vmatpush1.msra.mxu0 %v179
      %577 = vmatprep.subr.mxu0 0.0
      %578 = vmatpush1.msra.mxu0 0.0
      %579 = vmatprep.subr.mxu0 0.0
      %580 = vmatpush1.msra.mxu0 0.0
      %581 = vmatprep.subr.mxu0 0.0
      %582 = vmatpush1.msra.mxu0 0.0
      %583 = vmatprep.subr.mxu0 0.0
      %584 = vmatpush1.msra.mxu0 0.0
      %585 = vmatprep.subr.mxu0 0.0
      %586 = vmatpush1.msra.mxu0 0.0
      %587 = vmatprep.subr.mxu0 0.0
      %588 = vmatpush1.msra.mxu0 0.0
      %589 = vmatprep.subr.mxu0 0.0
      %590 = vmatpush1.msra.mxu0 0.0
      %591 = vmatprep.subr.mxu0 0.0
      %592 = vmatpush1.msra.mxu0 0.0
      %593 = vmatprep.subr.mxu0 0.0
      %594 = vmatpush1.msra.mxu0 0.0
      %595 = vmatprep.subr.mxu0 0.0
      %596 = vmatpush1.msra.mxu0 0.0
      %597 = vmatprep.subr.mxu0 0.0
      %598 = vmatpush1.msra.mxu0 0.0
      %599 = vmatprep.subr.mxu0 0.0
      %600 = vmatpush1.msra.mxu0 0.0
      %601 = vmatprep.subr.mxu0 0.0
      %602 = vmatpush1.msra.mxu0 0.0
      %603 = vmatprep.subr.mxu0 0.0
      %604 = vmatpush1.msra.mxu0 0.0
      %605 = vmatprep.subr.mxu0 0.0
      %606 = vmatpush1.msra.mxu0 0.0
      %607 = vmatprep.subr.mxu0 0.0
      %608 = vmatpush1.msra.mxu0 0.0
      %609 = vmatprep.subr.mxu0 0.0
      %610 = vmatpush1.msra.mxu0 0.0
      %611 = vmatprep.subr.mxu0 0.0
      %612 = vmatpush1.msra.mxu0 0.0
      %613 = vmatprep.subr.mxu0 0.0
      %614 = vmatpush1.msra.mxu0 0.0
      %615 = vmatprep.subr.mxu0 0.0
      %616 = vmatpush1.msra.mxu0 0.0
      %617 = vmatprep.subr.mxu0 0.0
      %618 = vmatpush1.msra.mxu0 0.0
      %619 = vmatprep.subr.mxu0 0.0
      %620 = vmatpush1.msra.mxu0 0.0
      %621 = vmatprep.subr.mxu0 0.0
      %622 = vmatpush1.msra.mxu0 0.0
      %623 = vmatprep.subr.mxu0 0.0
      %624 = vmatpush1.msra.mxu0 0.0
      %625 = vmatprep.subr.mxu0 0.0
      %626 = vmatpush1.msra.mxu0 0.0
      %627 = vmatprep.subr.mxu0 0.0
      %628 = vmatpush1.msra.mxu0 0.0
      %629 = vmatprep.subr.mxu0 0.0
      %630 = vmatpush1.msra.mxu0 0.0
      %631 = vmatprep.subr.mxu0 0.0
      %632 = vmatpush1.msra.mxu0 0.0
      %633 = vmatprep.subr.mxu0 0.0
      %634 = vmatpush1.msra.mxu0 0.0
      %635 = vmatprep.subr.mxu0 0.0
      %636 = vmatpush1.msra.mxu0 0.0
      %637 = vmatprep.mubr.f32.mxu0 0.0
      %638 = vmatmul.mubr.f32.gmra.mrb[0].mxu0 %v571
      %v639 = vpop.f32.mrb[0].mxu0
      %v640 = vadd.f32 0.0, %v639
      %v641 = vpop.f32.mrb[0].mxu0
      %642 = vdwg.mxu0
      %s643 = scalar_lea.vmem %s175, 16
      %644 = vst.msk [vmem:[%s643] sm:$0x3f] %vm337, %v640
      %s645 = scalar_lea.vmem %s169, 48
      %v646 = vld [vmem:[%s645] sm:$0xff]
      %v647 = vld [vmem:[%s645 + $0x8] sm:$0xf]
      %v649 = vsel %vm186, %v647, 0
      %651 = vmatprep.subr.mxu0 0.0
      %652 = vmatpush1.msra.mxu0 %v646
      %653 = vmatprep.subr.mxu0 0.0
      %654 = vmatpush1.msra.mxu0 %v649
      %655 = vmatprep.subr.mxu0 0.0
      %656 = vmatpush1.msra.mxu0 0.0
      %657 = vmatprep.subr.mxu0 0.0
      %658 = vmatpush1.msra.mxu0 0.0
      %659 = vmatprep.subr.mxu0 0.0
      %660 = vmatpush1.msra.mxu0 0.0
      %661 = vmatprep.subr.mxu0 0.0
      %662 = vmatpush1.msra.mxu0 0.0
      %663 = vmatprep.subr.mxu0 0.0
      %664 = vmatpush1.msra.mxu0 0.0
      %665 = vmatprep.subr.mxu0 0.0
      %666 = vmatpush1.msra.mxu0 0.0
      %667 = vmatprep.subr.mxu0 0.0
      %668 = vmatpush1.msra.mxu0 0.0
      %669 = vmatprep.subr.mxu0 0.0
      %670 = vmatpush1.msra.mxu0 0.0
      %671 = vmatprep.subr.mxu0 0.0
      %672 = vmatpush1.msra.mxu0 0.0
      %673 = vmatprep.subr.mxu0 0.0
      %674 = vmatpush1.msra.mxu0 0.0
      %675 = vmatprep.subr.mxu0 0.0
      %676 = vmatpush1.msra.mxu0 0.0
      %677 = vmatprep.subr.mxu0 0.0
      %678 = vmatpush1.msra.mxu0 0.0
      %679 = vmatprep.subr.mxu0 0.0
      %680 = vmatpush1.msra.mxu0 0.0
      %681 = vmatprep.subr.mxu0 0.0
      %682 = vmatpush1.msra.mxu0 0.0
      %683 = vmatprep.subr.mxu0 0.0
      %684 = vmatpush1.msra.mxu0 0.0
      %685 = vmatprep.subr.mxu0 0.0
      %686 = vmatpush1.msra.mxu0 0.0
      %687 = vmatprep.subr.mxu0 0.0
      %688 = vmatpush1.msra.mxu0 0.0
      %689 = vmatprep.subr.mxu0 0.0
      %690 = vmatpush1.msra.mxu0 0.0
      %691 = vmatprep.subr.mxu0 0.0
      %692 = vmatpush1.msra.mxu0 0.0
      %693 = vmatprep.subr.mxu0 0.0
      %694 = vmatpush1.msra.mxu0 0.0
      %695 = vmatprep.subr.mxu0 0.0
      %696 = vmatpush1.msra.mxu0 0.0
      %697 = vmatprep.subr.mxu0 0.0
      %698 = vmatpush1.msra.mxu0 0.0
      %699 = vmatprep.subr.mxu0 0.0
      %700 = vmatpush1.msra.mxu0 0.0
      %701 = vmatprep.subr.mxu0 0.0
      %702 = vmatpush1.msra.mxu0 0.0
      %703 = vmatprep.subr.mxu0 0.0
      %704 = vmatpush1.msra.mxu0 0.0
      %705 = vmatprep.subr.mxu0 0.0
      %706 = vmatpush1.msra.mxu0 0.0
      %707 = vmatprep.subr.mxu0 0.0
      %708 = vmatpush1.msra.mxu0 0.0
      %709 = vmatprep.subr.mxu0 0.0
      %710 = vmatpush1.msra.mxu0 0.0
      %711 = vmatprep.subr.mxu0 0.0
      %712 = vmatpush1.msra.mxu0 0.0
      %713 = vmatprep.subr.mxu0 0.0
      %714 = vmatpush1.msra.mxu0 0.0
      %715 = vmatprep.mubr.f32.mxu0 0.0
      %716 = vmatmul.mubr.f32.gmra.mrb[0].mxu0 %v184
      %v717 = vpop.f32.mrb[0].mxu0
      %v718 = vadd.f32 0.0, %v717
      %v719 = vpop.f32.mrb[0].mxu0
      %720 = vdwg.mxu0
      %721 = vst.msk [vmem:[#allocation2] sm:$0x3f] %vm260, %v718
      %v722 = vld [vmem:[#allocation2] sm:$0x3f]
      %v724 = vsel %vm263, %v722, 0
      %726 = vmatprep.subr.mxu0 0.0
      %727 = vmatpush1.msra.mxu0 %v178
      %728 = vmatprep.subr.mxu0 0.0
      %729 = vmatpush1.msra.mxu0 %v179
      %730 = vmatprep.subr.mxu0 0.0
      %731 = vmatpush1.msra.mxu0 0.0
      %732 = vmatprep.subr.mxu0 0.0
      %733 = vmatpush1.msra.mxu0 0.0
      %734 = vmatprep.subr.mxu0 0.0
      %735 = vmatpush1.msra.mxu0 0.0
      %736 = vmatprep.subr.mxu0 0.0
      %737 = vmatpush1.msra.mxu0 0.0
      %738 = vmatprep.subr.mxu0 0.0
      %739 = vmatpush1.msra.mxu0 0.0
      %740 = vmatprep.subr.mxu0 0.0
      %741 = vmatpush1.msra.mxu0 0.0
      %742 = vmatprep.subr.mxu0 0.0
      %743 = vmatpush1.msra.mxu0 0.0
      %744 = vmatprep.subr.mxu0 0.0
      %745 = vmatpush1.msra.mxu0 0.0
      %746 = vmatprep.subr.mxu0 0.0
      %747 = vmatpush1.msra.mxu0 0.0
      %748 = vmatprep.subr.mxu0 0.0
      %749 = vmatpush1.msra.mxu0 0.0
      %750 = vmatprep.subr.mxu0 0.0
      %751 = vmatpush1.msra.mxu0 0.0
      %752 = vmatprep.subr.mxu0 0.0
      %753 = vmatpush1.msra.mxu0 0.0
      %754 = vmatprep.subr.mxu0 0.0
      %755 = vmatpush1.msra.mxu0 0.0
      %756 = vmatprep.subr.mxu0 0.0
      %757 = vmatpush1.msra.mxu0 0.0
      %758 = vmatprep.subr.mxu0 0.0
      %759 = vmatpush1.msra.mxu0 0.0
      %760 = vmatprep.subr.mxu0 0.0
      %761 = vmatpush1.msra.mxu0 0.0
      %762 = vmatprep.subr.mxu0 0.0
      %763 = vmatpush1.msra.mxu0 0.0
      %764 = vmatprep.subr.mxu0 0.0
      %765 = vmatpush1.msra.mxu0 0.0
      %766 = vmatprep.subr.mxu0 0.0
      %767 = vmatpush1.msra.mxu0 0.0
      %768 = vmatprep.subr.mxu0 0.0
      %769 = vmatpush1.msra.mxu0 0.0
      %770 = vmatprep.subr.mxu0 0.0
      %771 = vmatpush1.msra.mxu0 0.0
      %772 = vmatprep.subr.mxu0 0.0
      %773 = vmatpush1.msra.mxu0 0.0
      %774 = vmatprep.subr.mxu0 0.0
      %775 = vmatpush1.msra.mxu0 0.0
      %776 = vmatprep.subr.mxu0 0.0
      %777 = vmatpush1.msra.mxu0 0.0
      %778 = vmatprep.subr.mxu0 0.0
      %779 = vmatpush1.msra.mxu0 0.0
      %780 = vmatprep.subr.mxu0 0.0
      %781 = vmatpush1.msra.mxu0 0.0
      %782 = vmatprep.subr.mxu0 0.0
      %783 = vmatpush1.msra.mxu0 0.0
      %784 = vmatprep.subr.mxu0 0.0
      %785 = vmatpush1.msra.mxu0 0.0
      %786 = vmatprep.subr.mxu0 0.0
      %787 = vmatpush1.msra.mxu0 0.0
      %788 = vmatprep.subr.mxu0 0.0
      %789 = vmatpush1.msra.mxu0 0.0
      %790 = vmatprep.mubr.f32.mxu0 0.0
      %791 = vmatmul.mubr.f32.gmra.mrb[0].mxu0 %v724
      %v792 = vpop.f32.mrb[0].mxu0
      %v793 = vadd.f32 0.0, %v792
      %v794 = vpop.f32.mrb[0].mxu0
      %795 = vdwg.mxu0
      %s796 = scalar_lea.vmem %s175, 24
      %797 = vst.msk [vmem:[%s796] sm:$0x3f] %vm337, %v793
      %s798 = scalar_lea.vmem %s169, 64
      %v799 = vld [vmem:[%s798] sm:$0xff]
      %v800 = vld [vmem:[%s798 + $0x8] sm:$0xf]
      %v802 = vsel %vm186, %v800, 0
      %804 = vmatprep.subr.mxu0 0.0
      %805 = vmatpush1.msra.mxu0 %v799
      %806 = vmatprep.subr.mxu0 0.0
      %807 = vmatpush1.msra.mxu0 %v802
      %808 = vmatprep.subr.mxu0 0.0
      %809 = vmatpush1.msra.mxu0 0.0
      %810 = vmatprep.subr.mxu0 0.0
      %811 = vmatpush1.msra.mxu0 0.0
      %812 = vmatprep.subr.mxu0 0.0
      %813 = vmatpush1.msra.mxu0 0.0
      %814 = vmatprep.subr.mxu0 0.0
      %815 = vmatpush1.msra.mxu0 0.0
      %816 = vmatprep.subr.mxu0 0.0
      %817 = vmatpush1.msra.mxu0 0.0
      %818 = vmatprep.subr.mxu0 0.0
      %819 = vmatpush1.msra.mxu0 0.0
      %820 = vmatprep.subr.mxu0 0.0
      %821 = vmatpush1.msra.mxu0 0.0
      %822 = vmatprep.subr.mxu0 0.0
      %823 = vmatpush1.msra.mxu0 0.0
      %824 = vmatprep.subr.mxu0 0.0
      %825 = vmatpush1.msra.mxu0 0.0
      %826 = vmatprep.subr.mxu0 0.0
      %827 = vmatpush1.msra.mxu0 0.0
      %828 = vmatprep.subr.mxu0 0.0
      %829 = vmatpush1.msra.mxu0 0.0
      %830 = vmatprep.subr.mxu0 0.0
      %831 = vmatpush1.msra.mxu0 0.0
      %832 = vmatprep.subr.mxu0 0.0
      %833 = vmatpush1.msra.mxu0 0.0
      %834 = vmatprep.subr.mxu0 0.0
      %835 = vmatpush1.msra.mxu0 0.0
      %836 = vmatprep.subr.mxu0 0.0
      %837 = vmatpush1.msra.mxu0 0.0
      %838 = vmatprep.subr.mxu0 0.0
      %839 = vmatpush1.msra.mxu0 0.0
      %840 = vmatprep.subr.mxu0 0.0
      %841 = vmatpush1.msra.mxu0 0.0
      %842 = vmatprep.subr.mxu0 0.0
      %843 = vmatpush1.msra.mxu0 0.0
      %844 = vmatprep.subr.mxu0 0.0
      %845 = vmatpush1.msra.mxu0 0.0
      %846 = vmatprep.subr.mxu0 0.0
      %847 = vmatpush1.msra.mxu0 0.0
      %848 = vmatprep.subr.mxu0 0.0
      %849 = vmatpush1.msra.mxu0 0.0
      %850 = vmatprep.subr.mxu0 0.0
      %851 = vmatpush1.msra.mxu0 0.0
      %852 = vmatprep.subr.mxu0 0.0
      %853 = vmatpush1.msra.mxu0 0.0
      %854 = vmatprep.subr.mxu0 0.0
      %855 = vmatpush1.msra.mxu0 0.0
      %856 = vmatprep.subr.mxu0 0.0
      %857 = vmatpush1.msra.mxu0 0.0
      %858 = vmatprep.subr.mxu0 0.0
      %859 = vmatpush1.msra.mxu0 0.0
      %860 = vmatprep.subr.mxu0 0.0
      %861 = vmatpush1.msra.mxu0 0.0
      %862 = vmatprep.subr.mxu0 0.0
      %863 = vmatpush1.msra.mxu0 0.0
      %864 = vmatprep.subr.mxu0 0.0
      %865 = vmatpush1.msra.mxu0 0.0
      %866 = vmatprep.subr.mxu0 0.0
      %867 = vmatpush1.msra.mxu0 0.0
      %868 = vmatprep.mubr.f32.mxu0 0.0
      %869 = vmatmul.mubr.f32.gmra.mrb[0].mxu0 %v184
      %v870 = vpop.f32.mrb[0].mxu0
      %v871 = vadd.f32 0.0, %v870
      %v872 = vpop.f32.mrb[0].mxu0
      %873 = vdwg.mxu0
      %874 = vst.msk [vmem:[#allocation2] sm:$0x3f] %vm260, %v871
      %v875 = vld [vmem:[#allocation2] sm:$0x3f]
      %v877 = vsel %vm263, %v875, 0
      %879 = vmatprep.subr.mxu0 0.0
      %880 = vmatpush1.msra.mxu0 %v178
      %881 = vmatprep.subr.mxu0 0.0
      %882 = vmatpush1.msra.mxu0 %v179
      %883 = vmatprep.subr.mxu0 0.0
      %884 = vmatpush1.msra.mxu0 0.0
      %885 = vmatprep.subr.mxu0 0.0
      %886 = vmatpush1.msra.mxu0 0.0
      %887 = vmatprep.subr.mxu0 0.0
      %888 = vmatpush1.msra.mxu0 0.0
      %889 = vmatprep.subr.mxu0 0.0
      %890 = vmatpush1.msra.mxu0 0.0
      %891 = vmatprep.subr.mxu0 0.0
      %892 = vmatpush1.msra.mxu0 0.0
      %893 = vmatprep.subr.mxu0 0.0
      %894 = vmatpush1.msra.mxu0 0.0
      %895 = vmatprep.subr.mxu0 0.0
      %896 = vmatpush1.msra.mxu0 0.0
      %897 = vmatprep.subr.mxu0 0.0
      %898 = vmatpush1.msra.mxu0 0.0
      %899 = vmatprep.subr.mxu0 0.0
      %900 = vmatpush1.msra.mxu0 0.0
      %901 = vmatprep.subr.mxu0 0.0
      %902 = vmatpush1.msra.mxu0 0.0
      %903 = vmatprep.subr.mxu0 0.0
      %904 = vmatpush1.msra.mxu0 0.0
      %905 = vmatprep.subr.mxu0 0.0
      %906 = vmatpush1.msra.mxu0 0.0
      %907 = vmatprep.subr.mxu0 0.0
      %908 = vmatpush1.msra.mxu0 0.0
      %909 = vmatprep.subr.mxu0 0.0
      %910 = vmatpush1.msra.mxu0 0.0
      %911 = vmatprep.subr.mxu0 0.0
      %912 = vmatpush1.msra.mxu0 0.0
      %913 = vmatprep.subr.mxu0 0.0
      %914 = vmatpush1.msra.mxu0 0.0
      %915 = vmatprep.subr.mxu0 0.0
      %916 = vmatpush1.msra.mxu0 0.0
      %917 = vmatprep.subr.mxu0 0.0
      %918 = vmatpush1.msra.mxu0 0.0
      %919 = vmatprep.subr.mxu0 0.0
      %920 = vmatpush1.msra.mxu0 0.0
      %921 = vmatprep.subr.mxu0 0.0
      %922 = vmatpush1.msra.mxu0 0.0
      %923 = vmatprep.subr.mxu0 0.0
      %924 = vmatpush1.msra.mxu0 0.0
      %925 = vmatprep.subr.mxu0 0.0
      %926 = vmatpush1.msra.mxu0 0.0
      %927 = vmatprep.subr.mxu0 0.0
      %928 = vmatpush1.msra.mxu0 0.0
      %929 = vmatprep.subr.mxu0 0.0
      %930 = vmatpush1.msra.mxu0 0.0
      %931 = vmatprep.subr.mxu0 0.0
      %932 = vmatpush1.msra.mxu0 0.0
      %933 = vmatprep.subr.mxu0 0.0
      %934 = vmatpush1.msra.mxu0 0.0
      %935 = vmatprep.subr.mxu0 0.0
      %936 = vmatpush1.msra.mxu0 0.0
      %937 = vmatprep.subr.mxu0 0.0
      %938 = vmatpush1.msra.mxu0 0.0
      %939 = vmatprep.subr.mxu0 0.0
      %940 = vmatpush1.msra.mxu0 0.0
      %941 = vmatprep.subr.mxu0 0.0
      %942 = vmatpush1.msra.mxu0 0.0
      %943 = vmatprep.mubr.f32.mxu0 0.0
      %944 = vmatmul.mubr.f32.gmra.mrb[0].mxu0 %v877
      %v945 = vpop.f32.mrb[0].mxu0
      %v946 = vadd.f32 0.0, %v945
      %v947 = vpop.f32.mrb[0].mxu0
      %948 = vdwg.mxu0
      %s949 = scalar_lea.vmem %s175, 32
      %950 = vst.msk [vmem:[%s949] sm:$0x3f] %vm337, %v946
      %s951 = scalar_lea.vmem %s169, 80
      %v952 = vld [vmem:[%s951] sm:$0xff]
      %v953 = vld [vmem:[%s951 + $0x8] sm:$0xf]
      %v955 = vsel %vm186, %v953, 0
      %957 = vmatprep.subr.mxu0 0.0
      %958 = vmatpush1.msra.mxu0 %v952
      %959 = vmatprep.subr.mxu0 0.0
      %960 = vmatpush1.msra.mxu0 %v955
      %961 = vmatprep.subr.mxu0 0.0
      %962 = vmatpush1.msra.mxu0 0.0
      %963 = vmatprep.subr.mxu0 0.0
      %964 = vmatpush1.msra.mxu0 0.0
      %965 = vmatprep.subr.mxu0 0.0
      %966 = vmatpush1.msra.mxu0 0.0
      %967 = vmatprep.subr.mxu0 0.0
      %968 = vmatpush1.msra.mxu0 0.0
      %969 = vmatprep.subr.mxu0 0.0
      %970 = vmatpush1.msra.mxu0 0.0
      %971 = vmatprep.subr.mxu0 0.0
      %972 = vmatpush1.msra.mxu0 0.0
      %973 = vmatprep.subr.mxu0 0.0
      %974 = vmatpush1.msra.mxu0 0.0
      %975 = vmatprep.subr.mxu0 0.0
      %976 = vmatpush1.msra.mxu0 0.0
      %977 = vmatprep.subr.mxu0 0.0
      %978 = vmatpush1.msra.mxu0 0.0
      %979 = vmatprep.subr.mxu0 0.0
      %980 = vmatpush1.msra.mxu0 0.0
      %981 = vmatprep.subr.mxu0 0.0
      %982 = vmatpush1.msra.mxu0 0.0
      %983 = vmatprep.subr.mxu0 0.0
      %984 = vmatpush1.msra.mxu0 0.0
      %985 = vmatprep.subr.mxu0 0.0
      %986 = vmatpush1.msra.mxu0 0.0
      %987 = vmatprep.subr.mxu0 0.0
      %988 = vmatpush1.msra.mxu0 0.0
      %989 = vmatprep.subr.mxu0 0.0
      %990 = vmatpush1.msra.mxu0 0.0
      %991 = vmatprep.subr.mxu0 0.0
      %992 = vmatpush1.msra.mxu0 0.0
      %993 = vmatprep.subr.mxu0 0.0
      %994 = vmatpush1.msra.mxu0 0.0
      %995 = vmatprep.subr.mxu0 0.0
      %996 = vmatpush1.msra.mxu0 0.0
      %997 = vmatprep.subr.mxu0 0.0
      %998 = vmatpush1.msra.mxu0 0.0
      %999 = vmatprep.subr.mxu0 0.0
      %1000 = vmatpush1.msra.mxu0 0.0
      %1001 = vmatprep.subr.mxu0 0.0
      %1002 = vmatpush1.msra.mxu0 0.0
      %1003 = vmatprep.subr.mxu0 0.0
      %1004 = vmatpush1.msra.mxu0 0.0
      %1005 = vmatprep.subr.mxu0 0.0
      %1006 = vmatpush1.msra.mxu0 0.0
      %1007 = vmatprep.subr.mxu0 0.0
      %1008 = vmatpush1.msra.mxu0 0.0
      %1009 = vmatprep.subr.mxu0 0.0
      %1010 = vmatpush1.msra.mxu0 0.0
      %1011 = vmatprep.subr.mxu0 0.0
      %1012 = vmatpush1.msra.mxu0 0.0
      %1013 = vmatprep.subr.mxu0 0.0
      %1014 = vmatpush1.msra.mxu0 0.0
      %1015 = vmatprep.subr.mxu0 0.0
      %1016 = vmatpush1.msra.mxu0 0.0
      %1017 = vmatprep.subr.mxu0 0.0
      %1018 = vmatpush1.msra.mxu0 0.0
      %1019 = vmatprep.subr.mxu0 0.0
      %1020 = vmatpush1.msra.mxu0 0.0
      %1021 = vmatprep.mubr.f32.mxu0 0.0
      %1022 = vmatmul.mubr.f32.gmra.mrb[0].mxu0 %v184
      %v1023 = vpop.f32.mrb[0].mxu0
      %v1024 = vadd.f32 0.0, %v1023
      %v1025 = vpop.f32.mrb[0].mxu0
      %1026 = vdwg.mxu0
      %1027 = vst.msk [vmem:[#allocation2] sm:$0x3f] %vm260, %v1024
      %v1028 = vld [vmem:[#allocation2] sm:$0x3f]
      %v1030 = vsel %vm263, %v1028, 0
      %1032 = vmatprep.subr.mxu0 0.0
      %1033 = vmatpush1.msra.mxu0 %v178
      %1034 = vmatprep.subr.mxu0 0.0
      %1035 = vmatpush1.msra.mxu0 %v179
      %1036 = vmatprep.subr.mxu0 0.0
      %1037 = vmatpush1.msra.mxu0 0.0
      %1038 = vmatprep.subr.mxu0 0.0
      %1039 = vmatpush1.msra.mxu0 0.0
      %1040 = vmatprep.subr.mxu0 0.0
      %1041 = vmatpush1.msra.mxu0 0.0
      %1042 = vmatprep.subr.mxu0 0.0
      %1043 = vmatpush1.msra.mxu0 0.0
      %1044 = vmatprep.subr.mxu0 0.0
      %1045 = vmatpush1.msra.mxu0 0.0
      %1046 = vmatprep.subr.mxu0 0.0
      %1047 = vmatpush1.msra.mxu0 0.0
      %1048 = vmatprep.subr.mxu0 0.0
      %1049 = vmatpush1.msra.mxu0 0.0
      %1050 = vmatprep.subr.mxu0 0.0
      %1051 = vmatpush1.msra.mxu0 0.0
      %1052 = vmatprep.subr.mxu0 0.0
      %1053 = vmatpush1.msra.mxu0 0.0
      %1054 = vmatprep.subr.mxu0 0.0
      %1055 = vmatpush1.msra.mxu0 0.0
      %1056 = vmatprep.subr.mxu0 0.0
      %1057 = vmatpush1.msra.mxu0 0.0
      %1058 = vmatprep.subr.mxu0 0.0
      %1059 = vmatpush1.msra.mxu0 0.0
      %1060 = vmatprep.subr.mxu0 0.0
      %1061 = vmatpush1.msra.mxu0 0.0
      %1062 = vmatprep.subr.mxu0 0.0
      %1063 = vmatpush1.msra.mxu0 0.0
      %1064 = vmatprep.subr.mxu0 0.0
      %1065 = vmatpush1.msra.mxu0 0.0
      %1066 = vmatprep.subr.mxu0 0.0
      %1067 = vmatpush1.msra.mxu0 0.0
      %1068 = vmatprep.subr.mxu0 0.0
      %1069 = vmatpush1.msra.mxu0 0.0
      %1070 = vmatprep.subr.mxu0 0.0
      %1071 = vmatpush1.msra.mxu0 0.0
      %1072 = vmatprep.subr.mxu0 0.0
      %1073 = vmatpush1.msra.mxu0 0.0
      %1074 = vmatprep.subr.mxu0 0.0
      %1075 = vmatpush1.msra.mxu0 0.0
      %1076 = vmatprep.subr.mxu0 0.0
      %1077 = vmatpush1.msra.mxu0 0.0
      %1078 = vmatprep.subr.mxu0 0.0
      %1079 = vmatpush1.msra.mxu0 0.0
      %1080 = vmatprep.subr.mxu0 0.0
      %1081 = vmatpush1.msra.mxu0 0.0
      %1082 = vmatprep.subr.mxu0 0.0
      %1083 = vmatpush1.msra.mxu0 0.0
      %1084 = vmatprep.subr.mxu0 0.0
      %1085 = vmatpush1.msra.mxu0 0.0
      %1086 = vmatprep.subr.mxu0 0.0
      %1087 = vmatpush1.msra.mxu0 0.0
      %1088 = vmatprep.subr.mxu0 0.0
      %1089 = vmatpush1.msra.mxu0 0.0
      %1090 = vmatprep.subr.mxu0 0.0
      %1091 = vmatpush1.msra.mxu0 0.0
      %1092 = vmatprep.subr.mxu0 0.0
      %1093 = vmatpush1.msra.mxu0 0.0
      %1094 = vmatprep.subr.mxu0 0.0
      %1095 = vmatpush1.msra.mxu0 0.0
      %1096 = vmatprep.mubr.f32.mxu0 0.0
      %1097 = vmatmul.mubr.f32.gmra.mrb[0].mxu0 %v1030
      %v1098 = vpop.f32.mrb[0].mxu0
      %v1099 = vadd.f32 0.0, %v1098
      %v1100 = vpop.f32.mrb[0].mxu0
      %1101 = vdwg.mxu0
      %s1102 = scalar_lea.vmem %s175, 40
      %1103 = vst.msk [vmem:[%s1102] sm:$0x3f] %vm337, %v1099
      %s1104 = scalar_lea.vmem %s169, 96
      %v1105 = vld [vmem:[%s1104] sm:$0xff]
      %v1106 = vld [vmem:[%s1104 + $0x8] sm:$0xf]
      %v1108 = vsel %vm186, %v1106, 0
      %1110 = vmatprep.subr.mxu0 0.0
      %1111 = vmatpush1.msra.mxu0 %v1105
      %1112 = vmatprep.subr.mxu0 0.0
      %1113 = vmatpush1.msra.mxu0 %v1108
      %1114 = vmatprep.subr.mxu0 0.0
      %1115 = vmatpush1.msra.mxu0 0.0
      %1116 = vmatprep.subr.mxu0 0.0
      %1117 = vmatpush1.msra.mxu0 0.0
      %1118 = vmatprep.subr.mxu0 0.0
      %1119 = vmatpush1.msra.mxu0 0.0
      %1120 = vmatprep.subr.mxu0 0.0
      %1121 = vmatpush1.msra.mxu0 0.0
      %1122 = vmatprep.subr.mxu0 0.0
      %1123 = vmatpush1.msra.mxu0 0.0
      %1124 = vmatprep.subr.mxu0 0.0
      %1125 = vmatpush1.msra.mxu0 0.0
      %1126 = vmatprep.subr.mxu0 0.0
      %1127 = vmatpush1.msra.mxu0 0.0
      %1128 = vmatprep.subr.mxu0 0.0
      %1129 = vmatpush1.msra.mxu0 0.0
      %1130 = vmatprep.subr.mxu0 0.0
      %1131 = vmatpush1.msra.mxu0 0.0
      %1132 = vmatprep.subr.mxu0 0.0
      %1133 = vmatpush1.msra.mxu0 0.0
      %1134 = vmatprep.subr.mxu0 0.0
      %1135 = vmatpush1.msra.mxu0 0.0
      %1136 = vmatprep.subr.mxu0 0.0
      %1137 = vmatpush1.msra.mxu0 0.0
      %1138 = vmatprep.subr.mxu0 0.0
      %1139 = vmatpush1.msra.mxu0 0.0
      %1140 = vmatprep.subr.mxu0 0.0
      %1141 = vmatpush1.msra.mxu0 0.0
      %1142 = vmatprep.subr.mxu0 0.0
      %1143 = vmatpush1.msra.mxu0 0.0
      %1144 = vmatprep.subr.mxu0 0.0
      %1145 = vmatpush1.msra.mxu0 0.0
      %1146 = vmatprep.subr.mxu0 0.0
      %1147 = vmatpush1.msra.mxu0 0.0
      %1148 = vmatprep.subr.mxu0 0.0
      %1149 = vmatpush1.msra.mxu0 0.0
      %1150 = vmatprep.subr.mxu0 0.0
      %1151 = vmatpush1.msra.mxu0 0.0
      %1152 = vmatprep.subr.mxu0 0.0
      %1153 = vmatpush1.msra.mxu0 0.0
      %1154 = vmatprep.subr.mxu0 0.0
      %1155 = vmatpush1.msra.mxu0 0.0
      %1156 = vmatprep.subr.mxu0 0.0
      %1157 = vmatpush1.msra.mxu0 0.0
      %1158 = vmatprep.subr.mxu0 0.0
      %1159 = vmatpush1.msra.mxu0 0.0
      %1160 = vmatprep.subr.mxu0 0.0
      %1161 = vmatpush1.msra.mxu0 0.0
      %1162 = vmatprep.subr.mxu0 0.0
      %1163 = vmatpush1.msra.mxu0 0.0
      %1164 = vmatprep.subr.mxu0 0.0
      %1165 = vmatpush1.msra.mxu0 0.0
      %1166 = vmatprep.subr.mxu0 0.0
      %1167 = vmatpush1.msra.mxu0 0.0
      %1168 = vmatprep.subr.mxu0 0.0
      %1169 = vmatpush1.msra.mxu0 0.0
      %1170 = vmatprep.subr.mxu0 0.0
      %1171 = vmatpush1.msra.mxu0 0.0
      %1172 = vmatprep.subr.mxu0 0.0
      %1173 = vmatpush1.msra.mxu0 0.0
      %1174 = vmatprep.mubr.f32.mxu0 0.0
      %1175 = vmatmul.mubr.f32.gmra.mrb[0].mxu0 %v184
      %v1176 = vpop.f32.mrb[0].mxu0
      %v1177 = vadd.f32 0.0, %v1176
      %v1178 = vpop.f32.mrb[0].mxu0
      %1179 = vdwg.mxu0
      %1180 = vst.msk [vmem:[#allocation2] sm:$0x3f] %vm260, %v1177
      %v1181 = vld [vmem:[#allocation2] sm:$0x3f]
      %v1183 = vsel %vm263, %v1181, 0
      %1185 = vmatprep.subr.mxu0 0.0
      %1186 = vmatpush1.msra.mxu0 %v178
      %1187 = vmatprep.subr.mxu0 0.0
      %1188 = vmatpush1.msra.mxu0 %v179
      %1189 = vmatprep.subr.mxu0 0.0
      %1190 = vmatpush1.msra.mxu0 0.0
      %1191 = vmatprep.subr.mxu0 0.0
      %1192 = vmatpush1.msra.mxu0 0.0
      %1193 = vmatprep.subr.mxu0 0.0
      %1194 = vmatpush1.msra.mxu0 0.0
      %1195 = vmatprep.subr.mxu0 0.0
      %1196 = vmatpush1.msra.mxu0 0.0
      %1197 = vmatprep.subr.mxu0 0.0
      %1198 = vmatpush1.msra.mxu0 0.0
      %1199 = vmatprep.subr.mxu0 0.0
      %1200 = vmatpush1.msra.mxu0 0.0
      %1201 = vmatprep.subr.mxu0 0.0
      %1202 = vmatpush1.msra.mxu0 0.0
      %1203 = vmatprep.subr.mxu0 0.0
      %1204 = vmatpush1.msra.mxu0 0.0
      %1205 = vmatprep.subr.mxu0 0.0
      %1206 = vmatpush1.msra.mxu0 0.0
      %1207 = vmatprep.subr.mxu0 0.0
      %1208 = vmatpush1.msra.mxu0 0.0
      %1209 = vmatprep.subr.mxu0 0.0
      %1210 = vmatpush1.msra.mxu0 0.0
      %1211 = vmatprep.subr.mxu0 0.0
      %1212 = vmatpush1.msra.mxu0 0.0
      %1213 = vmatprep.subr.mxu0 0.0
      %1214 = vmatpush1.msra.mxu0 0.0
      %1215 = vmatprep.subr.mxu0 0.0
      %1216 = vmatpush1.msra.mxu0 0.0
      %1217 = vmatprep.subr.mxu0 0.0
      %1218 = vmatpush1.msra.mxu0 0.0
      %1219 = vmatprep.subr.mxu0 0.0
      %1220 = vmatpush1.msra.mxu0 0.0
      %1221 = vmatprep.subr.mxu0 0.0
      %1222 = vmatpush1.msra.mxu0 0.0
      %1223 = vmatprep.subr.mxu0 0.0
      %1224 = vmatpush1.msra.mxu0 0.0
      %1225 = vmatprep.subr.mxu0 0.0
      %1226 = vmatpush1.msra.mxu0 0.0
      %1227 = vmatprep.subr.mxu0 0.0
      %1228 = vmatpush1.msra.mxu0 0.0
      %1229 = vmatprep.subr.mxu0 0.0
      %1230 = vmatpush1.msra.mxu0 0.0
      %1231 = vmatprep.subr.mxu0 0.0
      %1232 = vmatpush1.msra.mxu0 0.0
      %1233 = vmatprep.subr.mxu0 0.0
      %1234 = vmatpush1.msra.mxu0 0.0
      %1235 = vmatprep.subr.mxu0 0.0
      %1236 = vmatpush1.msra.mxu0 0.0
      %1237 = vmatprep.subr.mxu0 0.0
      %1238 = vmatpush1.msra.mxu0 0.0
      %1239 = vmatprep.subr.mxu0 0.0
      %1240 = vmatpush1.msra.mxu0 0.0
      %1241 = vmatprep.subr.mxu0 0.0
      %1242 = vmatpush1.msra.mxu0 0.0
      %1243 = vmatprep.subr.mxu0 0.0
      %1244 = vmatpush1.msra.mxu0 0.0
      %1245 = vmatprep.subr.mxu0 0.0
      %1246 = vmatpush1.msra.mxu0 0.0
      %1247 = vmatprep.subr.mxu0 0.0
      %1248 = vmatpush1.msra.mxu0 0.0
      %1249 = vmatprep.mubr.f32.mxu0 0.0
      %1250 = vmatmul.mubr.f32.gmra.mrb[0].mxu0 %v1183
      %v1251 = vpop.f32.mrb[0].mxu0
      %v1252 = vadd.f32 0.0, %v1251
      %v1253 = vpop.f32.mrb[0].mxu0
      %1254 = vdwg.mxu0
      %s1255 = scalar_lea.vmem %s175, 48
      %1256 = vst.msk [vmem:[%s1255] sm:$0x3f] %vm337, %v1252
      %s1257 = scalar_lea.vmem %s169, 112
      %v1258 = vld [vmem:[%s1257] sm:$0xff]
      %v1259 = vld [vmem:[%s1257 + $0x8] sm:$0xf]
      %v1261 = vsel %vm186, %v1259, 0
      %1263 = vmatprep.subr.mxu0 0.0
      %1264 = vmatpush1.msra.mxu0 %v1258
      %1265 = vmatprep.subr.mxu0 0.0
      %1266 = vmatpush1.msra.mxu0 %v1261
      %1267 = vmatprep.subr.mxu0 0.0
      %1268 = vmatpush1.msra.mxu0 0.0
      %1269 = vmatprep.subr.mxu0 0.0
      %1270 = vmatpush1.msra.mxu0 0.0
      %1271 = vmatprep.subr.mxu0 0.0
      %1272 = vmatpush1.msra.mxu0 0.0
      %1273 = vmatprep.subr.mxu0 0.0
      %1274 = vmatpush1.msra.mxu0 0.0
      %1275 = vmatprep.subr.mxu0 0.0
      %1276 = vmatpush1.msra.mxu0 0.0
      %1277 = vmatprep.subr.mxu0 0.0
      %1278 = vmatpush1.msra.mxu0 0.0
      %1279 = vmatprep.subr.mxu0 0.0
      %1280 = vmatpush1.msra.mxu0 0.0
      %1281 = vmatprep.subr.mxu0 0.0
      %1282 = vmatpush1.msra.mxu0 0.0
      %1283 = vmatprep.subr.mxu0 0.0
      %1284 = vmatpush1.msra.mxu0 0.0
      %1285 = vmatprep.subr.mxu0 0.0
      %1286 = vmatpush1.msra.mxu0 0.0
      %1287 = vmatprep.subr.mxu0 0.0
      %1288 = vmatpush1.msra.mxu0 0.0
      %1289 = vmatprep.subr.mxu0 0.0
      %1290 = vmatpush1.msra.mxu0 0.0
      %1291 = vmatprep.subr.mxu0 0.0
      %1292 = vmatpush1.msra.mxu0 0.0
      %1293 = vmatprep.subr.mxu0 0.0
      %1294 = vmatpush1.msra.mxu0 0.0
      %1295 = vmatprep.subr.mxu0 0.0
      %1296 = vmatpush1.msra.mxu0 0.0
      %1297 = vmatprep.subr.mxu0 0.0
      %1298 = vmatpush1.msra.mxu0 0.0
      %1299 = vmatprep.subr.mxu0 0.0
      %1300 = vmatpush1.msra.mxu0 0.0
      %1301 = vmatprep.subr.mxu0 0.0
      %1302 = vmatpush1.msra.mxu0 0.0
      %1303 = vmatprep.subr.mxu0 0.0
      %1304 = vmatpush1.msra.mxu0 0.0
      %1305 = vmatprep.subr.mxu0 0.0
      %1306 = vmatpush1.msra.mxu0 0.0
      %1307 = vmatprep.subr.mxu0 0.0
      %1308 = vmatpush1.msra.mxu0 0.0
      %1309 = vmatprep.subr.mxu0 0.0
      %1310 = vmatpush1.msra.mxu0 0.0
      %1311 = vmatprep.subr.mxu0 0.0
      %1312 = vmatpush1.msra.mxu0 0.0
      %1313 = vmatprep.subr.mxu0 0.0
      %1314 = vmatpush1.msra.mxu0 0.0
      %1315 = vmatprep.subr.mxu0 0.0
      %1316 = vmatpush1.msra.mxu0 0.0
      %1317 = vmatprep.subr.mxu0 0.0
      %1318 = vmatpush1.msra.mxu0 0.0
      %1319 = vmatprep.subr.mxu0 0.0
      %1320 = vmatpush1.msra.mxu0 0.0
      %1321 = vmatprep.subr.mxu0 0.0
      %1322 = vmatpush1.msra.mxu0 0.0
      %1323 = vmatprep.subr.mxu0 0.0
      %1324 = vmatpush1.msra.mxu0 0.0
      %1325 = vmatprep.subr.mxu0 0.0
      %1326 = vmatpush1.msra.mxu0 0.0
      %1327 = vmatprep.mubr.f32.mxu0 0.0
      %1328 = vmatmul.mubr.f32.gmra.mrb[0].mxu0 %v184
      %v1329 = vpop.f32.mrb[0].mxu0
      %v1330 = vadd.f32 0.0, %v1329
      %v1331 = vpop.f32.mrb[0].mxu0
      %1332 = vdwg.mxu0
      %1333 = vst.msk [vmem:[#allocation2] sm:$0x3f] %vm260, %v1330
      %v1334 = vld [vmem:[#allocation2] sm:$0x3f]
      %v1336 = vsel %vm263, %v1334, 0
      %1338 = vmatprep.subr.mxu0 0.0
      %1339 = vmatpush1.msra.mxu0 %v178
      %1340 = vmatprep.subr.mxu0 0.0
      %1341 = vmatpush1.msra.mxu0 %v179
      %1342 = vmatprep.subr.mxu0 0.0
      %1343 = vmatpush1.msra.mxu0 0.0
      %1344 = vmatprep.subr.mxu0 0.0
      %1345 = vmatpush1.msra.mxu0 0.0
      %1346 = vmatprep.subr.mxu0 0.0
      %1347 = vmatpush1.msra.mxu0 0.0
      %1348 = vmatprep.subr.mxu0 0.0
      %1349 = vmatpush1.msra.mxu0 0.0
      %1350 = vmatprep.subr.mxu0 0.0
      %1351 = vmatpush1.msra.mxu0 0.0
      %1352 = vmatprep.subr.mxu0 0.0
      %1353 = vmatpush1.msra.mxu0 0.0
      %1354 = vmatprep.subr.mxu0 0.0
      %1355 = vmatpush1.msra.mxu0 0.0
      %1356 = vmatprep.subr.mxu0 0.0
      %1357 = vmatpush1.msra.mxu0 0.0
      %1358 = vmatprep.subr.mxu0 0.0
      %1359 = vmatpush1.msra.mxu0 0.0
      %1360 = vmatprep.subr.mxu0 0.0
      %1361 = vmatpush1.msra.mxu0 0.0
      %1362 = vmatprep.subr.mxu0 0.0
      %1363 = vmatpush1.msra.mxu0 0.0
      %1364 = vmatprep.subr.mxu0 0.0
      %1365 = vmatpush1.msra.mxu0 0.0
      %1366 = vmatprep.subr.mxu0 0.0
      %1367 = vmatpush1.msra.mxu0 0.0
      %1368 = vmatprep.subr.mxu0 0.0
      %1369 = vmatpush1.msra.mxu0 0.0
      %1370 = vmatprep.subr.mxu0 0.0
      %1371 = vmatpush1.msra.mxu0 0.0
      %1372 = vmatprep.subr.mxu0 0.0
      %1373 = vmatpush1.msra.mxu0 0.0
      %1374 = vmatprep.subr.mxu0 0.0
      %1375 = vmatpush1.msra.mxu0 0.0
      %1376 = vmatprep.subr.mxu0 0.0
      %1377 = vmatpush1.msra.mxu0 0.0
      %1378 = vmatprep.subr.mxu0 0.0
      %1379 = vmatpush1.msra.mxu0 0.0
      %1380 = vmatprep.subr.mxu0 0.0
      %1381 = vmatpush1.msra.mxu0 0.0
      %1382 = vmatprep.subr.mxu0 0.0
      %1383 = vmatpush1.msra.mxu0 0.0
      %1384 = vmatprep.subr.mxu0 0.0
      %1385 = vmatpush1.msra.mxu0 0.0
      %1386 = vmatprep.subr.mxu0 0.0
      %1387 = vmatpush1.msra.mxu0 0.0
      %1388 = vmatprep.subr.mxu0 0.0
      %1389 = vmatpush1.msra.mxu0 0.0
      %1390 = vmatprep.subr.mxu0 0.0
      %1391 = vmatpush1.msra.mxu0 0.0
      %1392 = vmatprep.subr.mxu0 0.0
      %1393 = vmatpush1.msra.mxu0 0.0
      %1394 = vmatprep.subr.mxu0 0.0
      %1395 = vmatpush1.msra.mxu0 0.0
      %1396 = vmatprep.subr.mxu0 0.0
      %1397 = vmatpush1.msra.mxu0 0.0
      %1398 = vmatprep.subr.mxu0 0.0
      %1399 = vmatpush1.msra.mxu0 0.0
      %1400 = vmatprep.subr.mxu0 0.0
      %1401 = vmatpush1.msra.mxu0 0.0
      %1402 = vmatprep.mubr.f32.mxu0 0.0
      %1403 = vmatmul.mubr.f32.gmra.mrb[0].mxu0 %v1336
      %v1404 = vpop.f32.mrb[0].mxu0
      %v1405 = vadd.f32 0.0, %v1404
      %v1406 = vpop.f32.mrb[0].mxu0
      %1407 = vdwg.mxu0
      %s1408 = scalar_lea.vmem %s175, 56
      %1409 = vst.msk [vmem:[%s1408] sm:$0x3f] %vm337, %v1405
      %s1410 = smul.u32 8, %s14
      %p1411 = scmp.lt.s32.totalorder %s1410, 31
      %s1412 = scalar_select %p1411, %s1410, 31
      %s1413 = smul.addr %s1412, 8
      %s1414 = scalar_lea.vmem %s3, %s1413
      // Predicated region
      $region33: #{tpu_custom_call.1} parent=31 // pred_check
        %p1415 = pneg %p100
      $region34: #{tpu_custom_call.1} parent=31 // pred_check_branch
        %1417 = sbr.rel (%p1415) target = $region36
      $region35: #{tpu_custom_call.1} parent=31 // pred_region
        %s1418 = smul.u32 8, %s14
      $region36: #{tpu_custom_call.1} parent=31 // pred_fallthru
        _
    $region32: #{tpu_custom_call.1} parent=5 // pred_fallthru
      _
    %p1419 = scmp.le.s32.totalorder 2, %s9
    // Predicated region
    $region37: #{tpu_custom_call.1} parent=5 // pred_check
      %p1420 = pneg %p1419
    $region38: #{tpu_custom_call.1} parent=5 // pred_check_branch
      %1422 = sbr.rel (%p1420) target = $region40
    $region39: #{tpu_custom_call.1} parent=5 // pred_region
      %s1423 = ssub.s32 %s9, 2
      // Predicated region
      $region41: #{tpu_custom_call.1} parent=39 // pred_check
        %p1424 = pneg %p106
      $region42: #{tpu_custom_call.1} parent=39 // pred_check_branch
        %1426 = sbr.rel (%p1424) target = $region44
      $region43: #{tpu_custom_call.1} parent=39 // pred_region
        %s1427 = smul.u32 8, %s15
        %p1428 = scmp.lt.s32.totalorder %s1427, 31
        %s1429 = scalar_select %p1428, %s1427, 31
        %s1430 = smul.addr %s1429, 8
        %s1431 = scalar_lea.vmem %s3, %s1430
      $region44: #{tpu_custom_call.1} parent=39 // pred_fallthru
        _
    $region40: #{tpu_custom_call.1} parent=5 // pred_fallthru
      _
  $region6: #{tpu_custom_call.1} parent=0 // loop_footer
    %s13 = sadd.s32 1, %s9
  $region7: #{tpu_custom_call.1} parent=0 // loop_footer_branch
    %8 = sbr.rel target = $region3
  $region8: #{tpu_custom_call.1} parent=0 // loop_exit
    _

</llo_original>
